<compile_context>
chip_gen: v5e
topology: v5e:2x2
jax: 0.10.0
libtpu: 0.0.40
codegen_flags: <defaults>
</compile_context>

<pallas_src>
import functools

import jax
import jax.numpy as jnp
from jax.experimental import pallas as pl
from jax.experimental.pallas import tpu as pltpu


# ----------------------------------------------------------------------------
# Kernel 1: APPNP propagation per meta-path, fused with semantic-attention scores.
# ----------------------------------------------------------------------------
def _appnp_attn_kernel(a_ref, h0_ref, w1_ref, b1_ref, w2_ref,
                       z_ref, score_ref, h_state, *, alpha):
    """Grid = (M, k, R).

    a_ref:     (TM, N)  bf16  row strip of A_m (meta-path dim squeezed)
    h0_ref:    (N, D)   f32   VMEM-resident original features
    w1_ref:    (D, H)   bf16  projection weight
    b1_ref:    (1, H)   f32   projection bias
    w2_ref:    (1, H)   f32   attention vector (Linear(H,1) weight as a row)
    z_ref:     (1, TM, D) bf16 output tile of semantic embedding for meta-path m
                              (written ONLY on the last APPNP iteration)
    score_ref: (1, 8, H)  f32 per-meta-path score accumulator (all 8 rows identical)
    h_state:   (2N, D)  bf16  ping-pong propagation state (scratch)
    """
    t = pl.program_id(1)                     # APPNP iteration
    r = pl.program_id(2)                     # row tile
    tm = a_ref.shape[0]
    n_nodes = h0_ref.shape[0]
    k_layers = pl.num_programs(1)

    @pl.when((t == 0) & (r == 0))
    def _init():
        # New meta-path: reset the propagation state to h0 and zero the score acc.
        h_state[0:n_nodes, :] = h0_ref[...].astype(jnp.bfloat16)
        score_ref[...] = jnp.zeros_like(score_ref)

    cur_slot = t % 2
    nxt_slot = 1 - cur_slot
    cur_base = pl.multiple_of(cur_slot * n_nodes, tm)
    nxt_base = pl.multiple_of(nxt_slot * n_nodes, tm)
    row0 = pl.multiple_of(r * tm, tm)

    a_tile = a_ref[...]                                         # (TM, N) bf16
    h_cur = h_state[pl.ds(cur_base, n_nodes), :]                # (N, D)  bf16
    prop = jnp.dot(a_tile, h_cur, preferred_element_type=jnp.float32)   # MXU, f32 acc
    h_new = (1.0 - alpha) * prop + alpha * h0_ref[pl.ds(row0, tm), :]   # f32 blend

    # Next-iteration state (bf16); skipped on the last iteration (never read again).
    @pl.when(t < k_layers - 1)
    def _store_state():
        h_state[pl.ds(nxt_base + row0, tm), :] = h_new.astype(jnp.bfloat16)

    @pl.when(t == k_layers - 1)
    def _tail():
        # Final semantic embedding tile: single bf16 HBM writeback per (m, r).
        z_ref[0] = h_new.astype(z_ref.dtype)
        # Fused semantic-attention score while the z tile is still in VMEM.
        s = jnp.tanh(
            jnp.dot(h_new.astype(jnp.bfloat16), w1_ref[...],
                    preferred_element_type=jnp.float32) + b1_ref[...])    # (TM, H)
        partial = jnp.sum(s * w2_ref[...], axis=0, keepdims=True)         # (1, H)
        score_ref[...] = score_ref[...] + partial                         # broadcast over 8 rows


# ----------------------------------------------------------------------------
# Kernel 2: weighted combine over meta-paths, tiled over nodes (f32 accumulation).
# ----------------------------------------------------------------------------
def _combine_kernel(beta_ref, z_ref, out_ref):
    """Grid = (R2,). beta_ref: SMEM (M,) f32; z_ref: (M, TM2, D) bf16; out_ref: (TM2, D) f32."""
    num_paths = z_ref.shape[0]
    acc = beta_ref[0] * z_ref[0].astype(jnp.float32)
    for m in range(1, num_paths):
        acc = acc + beta_ref[m] * z_ref[m].astype(jnp.float32)
    out_ref[...] = acc.astype(out_ref.dtype)


# ----------------------------------------------------------------------------
# VMEM working-set estimates (default double-buffering assumed for pipelined operands).
# ----------------------------------------------------------------------------
def _kernel1_vmem_bytes(tm, n, d, h):
    a_strip = 2 * tm * n * 2          # bf16 A row strip, double-buffered
    h0 = 2 * n * d * 4                # f32 resident features
    w1 = 2 * d * h * 2                # bf16 projection weight
    small = 2 * (2 * h * 4)           # b1 + w2
    z_out = 2 * tm * d * 2            # bf16 z output tile
    score_out = 2 * 8 * h * 4
    h_state = 2 * n * d * 2           # bf16 ping-pong scratch
    return a_strip + h0 + w1 + small + z_out + score_out + h_state


def _kernel2_vmem_bytes(tm2, m, d):
    return 2 * m * tm2 * d * 2 + 2 * tm2 * d * 4


# ----------------------------------------------------------------------------
# HANLayer forward (tiny softmax glue in JAX, hot paths in Pallas).
# ----------------------------------------------------------------------------
def han_layer_forward(a_stack, h, params, *, k_layers, alpha,
                      tm=None, vmem_budget_bytes=48 * 1024 * 1024):
    M, N, _ = a_stack.shape
    D = h.shape[1]
    H = params["w1"].shape[1]

    assert N % 16 == 0, "node count must be a multiple of 16 (bf16 sublane packing)"

    if tm is None:
        # Largest lane/sublane-friendly row tile whose working set fits the VMEM budget
        # (48 MiB default keeps headroom inside v7x's 64 MiB/TC; v5e/v6e have 128 MiB).
        for cand in (512, 256, 128):
            if N % cand == 0 and _kernel1_vmem_bytes(cand, N, D, H) <= vmem_budget_bytes:
                tm = cand
                break
        else:
            tm = N
    assert N % tm == 0 and tm % 16 == 0 and (tm % 128 == 0 or tm == N), \
        "row tile must divide N and be a multiple of 128 (or equal N), >= multiple of 16"
    r_tiles = N // tm

    est1 = _kernel1_vmem_bytes(tm, N, D, H)
    vmem_limit1 = min(60 * 1024 * 1024,
                      max(32 * 1024 * 1024, int(1.5 * est1) + (4 << 20)))

    a_bf = a_stack.astype(jnp.bfloat16)                    # halves A HBM traffic + MXU-friendly
    h_f32 = h.astype(jnp.float32)
    w1_bf = params["w1"].astype(jnp.bfloat16)              # (D, H)
    b1 = params["b1"].reshape(1, H).astype(jnp.float32)
    w2 = params["w2"].reshape(1, H).astype(jnp.float32)    # Linear(H, 1) weight as a row vector

    kernel1 = functools.partial(_appnp_attn_kernel, alpha=alpha)
    last_t = k_layers - 1

    def z_index_map(m, t, r):
        # Intermediate APPNP iterations all map onto block (m, 0, 0); since the kernel
        # only writes z on t == k-1, no intermediate HBM writeback is generated.
        return (m, jnp.where(t == last_t, r, 0), 0)

    cost1 = pl.CostEstimate(
        flops=int(2 * M * k_layers * N * N * D + 2 * M * N * D * H + 2 * M * N * H),
        transcendentals=int(M * N * H),
        bytes_accessed=int(M * k_layers * N * N * 2 + N * D * 4 + M * N * D * 2
                           + M * 8 * H * 4 + D * H * 2 + 2 * H * 4),
    )

    z, score_acc = pl.pallas_call(
        kernel1,
        out_shape=(
            jax.ShapeDtypeStruct((M, N, D), jnp.bfloat16),   # semantic embeddings z (bf16)
            jax.ShapeDtypeStruct((M, 8, H), jnp.float32),    # per-meta-path score accumulators
        ),
        grid_spec=pltpu.PrefetchScalarGridSpec(
            num_scalar_prefetch=0,
            grid=(M, k_layers, r_tiles),
            in_specs=[
                pl.BlockSpec((pl.Squeezed(), tm, N), lambda m, t, r: (m, r, 0)),  # A row strip
                pl.BlockSpec((N, D), lambda m, t, r: (0, 0)),                     # h0 (resident)
                pl.BlockSpec((D, H), lambda m, t, r: (0, 0)),                     # W1 (resident)
                pl.BlockSpec((1, H), lambda m, t, r: (0, 0)),                     # b1
                pl.BlockSpec((1, H), lambda m, t, r: (0, 0)),                     # w2
            ],
            out_specs=(
                pl.BlockSpec((1, tm, D), z_index_map),
                pl.BlockSpec((1, 8, H), lambda m, t, r: (m, 0, 0)),
            ),
            scratch_shapes=[pltpu.VMEM((2 * N, D), jnp.bfloat16)],                # h ping-pong
        ),
        compiler_params=pltpu.CompilerParams(
            dimension_semantics=("parallel", "arbitrary", "arbitrary"),
            vmem_limit_bytes=vmem_limit1,
        ),
        cost_estimate=cost1,
    )(a_bf, h_f32, w1_bf, b1, w2)

    # Tiny per-meta-path softmax in plain JAX (M values).
    w_scores = jnp.sum(score_acc[:, 0, :], axis=-1) / N    # mean over nodes of projected score
    beta = jax.nn.softmax(w_scores)                        # (M,)

    # Kernel 2 gets its own, larger row tile (streaming combine; bigger tiles amortize
    # the ~0.35 us per-grid-step overhead).
    tm2 = None
    for cand in (1024, 512, 256, 128):
        if N % cand == 0 and _kernel2_vmem_bytes(cand, M, D) <= vmem_budget_bytes:
            tm2 = cand
            break
    if tm2 is None:
        tm2 = tm
    r_tiles2 = N // tm2
    est2 = _kernel2_vmem_bytes(tm2, M, D)
    vmem_limit2 = min(60 * 1024 * 1024,
                      max(32 * 1024 * 1024, int(1.5 * est2) + (2 << 20)))

    cost2 = pl.CostEstimate(
        flops=int(2 * M * N * D),
        transcendentals=0,
        bytes_accessed=int(M * N * D * 2 + N * D * 4 + M * 4),
    )

    out = pl.pallas_call(
        _combine_kernel,
        out_shape=jax.ShapeDtypeStruct((N, D), jnp.float32),
        grid_spec=pltpu.PrefetchScalarGridSpec(
            num_scalar_prefetch=1,                                  # beta lives in SMEM
            grid=(r_tiles2,),
            in_specs=[pl.BlockSpec((M, tm2, D), lambda r, beta: (0, r, 0))],
            out_specs=pl.BlockSpec((tm2, D), lambda r, beta: (r, 0)),
        ),
        compiler_params=pltpu.CompilerParams(
            dimension_semantics=("parallel",),
            vmem_limit_bytes=vmem_limit2,
        ),
        cost_estimate=cost2,
    )(beta, z)
    return out


# ----------------------------------------------------------------------------
# Helpers and pure-JAX reference (mirrors the kernel's bf16 matmul / bf16-z precision).
# ----------------------------------------------------------------------------
def sym_normalize(adj):
    """D^{-1/2} A D^{-1/2}, degrees clamped to >= 1 (dense stand-in for the DGL graph)."""
    deg = jnp.clip(jnp.sum(adj, axis=-1), 1.0, None)
    d_inv_sqrt = 1.0 / jnp.sqrt(deg)
    return adj * d_inv_sqrt[:, None] * d_inv_sqrt[None, :]


def reference_forward(a_stack, h, params, *, k_layers, alpha):
    M = a_stack.shape[0]
    H = params["w1"].shape[1]
    a_bf = a_stack.astype(jnp.bfloat16)
    w1_bf = params["w1"].astype(jnp.bfloat16)
    zs = []
    for m in range(M):
        cur = h.astype(jnp.bfloat16)
        hm = h
        for _ in range(k_layers):
            hm = (1.0 - alpha) * jnp.dot(a_bf[m], cur,
                                         preferred_element_type=jnp.float32) + alpha * h
            cur = hm.astype(jnp.bfloat16)
        zs.append(hm)
    z = jnp.stack(zs, axis=0)                                          # (M, N, D) f32
    z_bf = z.astype(jnp.bfloat16)                                      # kernel stores z in bf16
    s = jnp.tanh(jnp.einsum("mnd,dh->mnh", z_bf, w1_bf,
                            preferred_element_type=jnp.float32)
                 + params["b1"].reshape(1, 1, H))
    scores = jnp.einsum("mnh,h->mn", s, params["w2"].reshape(H))       # (M, N)
    w = scores.mean(axis=1)                                            # (M,)
    beta = jax.nn.softmax(w)                                           # (M,)
    return jnp.einsum("m,mnd->nd", beta, z_bf.astype(jnp.float32))


if __name__ == "__main__":
    # Small, deterministic configuration (lane-dense feature dim).
    num_meta_paths = 3      # M
    num_nodes = 256         # N  (multiple of the row tile)
    hidden_size = 128       # D  (node feature dim = SemanticAttention in_size)
    attn_hidden = 128       # H  (SemanticAttention hidden_size)
    k_layers = 3
    alpha = 0.1

    key = jax.random.PRNGKey(0)
    k_feat, k_adj, k_w1, k_b1, k_w2 = jax.random.split(key, 5)

    # Node features.
    h = jax.random.normal(k_feat, (num_nodes, hidden_size), dtype=jnp.float32)

    # One random undirected graph per meta-path, symmetrically normalized (dense).
    adj_raw = (jax.random.uniform(k_adj, (num_meta_paths, num_nodes, num_nodes)) > 0.6
               ).astype(jnp.float32)
    adj_raw = jnp.maximum(adj_raw, jnp.transpose(adj_raw, (0, 2, 1)))
    a_stack = jax.vmap(sym_normalize)(adj_raw)

    # SemanticAttention parameters, stored pre-transposed for x @ W layout.
    params = {
        "w1": jax.random.normal(k_w1, (hidden_size, attn_hidden), dtype=jnp.float32) * 0.1,
        "b1": jax.random.normal(k_b1, (1, attn_hidden), dtype=jnp.float32) * 0.1,
        "w2": jax.random.normal(k_w2, (attn_hidden, 1), dtype=jnp.float32) * 0.1,
    }

    out = han_layer_forward(a_stack, h, params, k_layers=k_layers, alpha=alpha)
    out = jax.block_until_ready(out)

    ref = reference_forward(a_stack, h, params, k_layers=k_layers, alpha=alpha)
    assert out.shape == (num_nodes, hidden_size)
    err = jnp.max(jnp.abs(out - ref))
    assert jnp.allclose(out, ref, atol=2e-3, rtol=2e-3), f"Pallas mismatch, max abs err {err}"

    print("KERNEL_OK")
</pallas_src>

<mosaic_0001>
module attributes {stable_mosaic.version = 11 : i64} {
  func.func @_appnp_attn_kernel(%arg0: i32, %arg1: i32, %arg2: i32, %arg3: memref<1x256x256xbf16, #tpu.memory_space<vmem>>, %arg4: memref<256x128xf32, #tpu.memory_space<vmem>>, %arg5: memref<128x128xbf16, #tpu.memory_space<vmem>>, %arg6: memref<1x128xf32, #tpu.memory_space<vmem>>, %arg7: memref<1x128xf32, #tpu.memory_space<vmem>>, %arg8: memref<1x256x128xbf16, #tpu.memory_space<vmem>>, %arg9: memref<1x8x128xf32, #tpu.memory_space<vmem>>, %arg10: memref<512x128xbf16, #tpu.memory_space<vmem>>) attributes {dimension_semantics = [#tpu.dimension_semantics<parallel>, #tpu.dimension_semantics<arbitrary>, #tpu.dimension_semantics<arbitrary>], iteration_bounds = array<i64: 3, 3, 1>, scalar_prefetch = 0 : i64, scratch_operands = 1 : i64, tpu.core_type = #tpu.core_type<tc>, window_params = [{transform_indices = @transform_0, window_bounds = array<i64: 1, 256, 256>}, {pipeline_mode = #tpu.pipeline_mode<synchronous>, transform_indices = @transform_1, window_bounds = array<i64: 256, 128>}, {pipeline_mode = #tpu.pipeline_mode<synchronous>, transform_indices = @transform_2, window_bounds = array<i64: 128, 128>}, {pipeline_mode = #tpu.pipeline_mode<synchronous>, transform_indices = @transform_3, window_bounds = array<i64: 1, 128>}, {pipeline_mode = #tpu.pipeline_mode<synchronous>, transform_indices = @transform_4, window_bounds = array<i64: 1, 128>}, {transform_indices = @transform_5, window_bounds = array<i64: 1, 256, 128>}, {transform_indices = @transform_6, window_bounds = array<i64: 1, 8, 128>}]} {
    %c0_i32 = arith.constant 0 : i32
    %0 = arith.cmpi eq, %arg1, %c0_i32 : i32
    %c0_i32_0 = arith.constant 0 : i32
    %1 = arith.cmpi eq, %arg2, %c0_i32_0 : i32
    %2 = arith.andi %0, %1 : i1
    %3 = arith.extui %2 : i1 to i32
    %c0_i32_1 = arith.constant 0 : i32
    %4 = arith.cmpi ne, %3, %c0_i32_1 : i32
    scf.if %4 {
      %c0_19 = arith.constant 0 : index
      %c0_20 = arith.constant 0 : index
      %40 = vector.load %arg4[%c0_19, %c0_20] : memref<256x128xf32, #tpu.memory_space<vmem>>, vector<256x128xf32>
      %41 = arith.truncf %40 : vector<256x128xf32> to vector<256x128xbf16>
      %c0_21 = arith.constant 0 : index
      %c0_22 = arith.constant 0 : index
      %42 = vector.load %arg10[%c0_21, %c0_22] : memref<512x128xbf16, #tpu.memory_space<vmem>>, vector<256x128xbf16>
      tpu.vector_store %arg10[%c0_21, %c0_22], %41 {strides = array<i32>} : memref<512x128xbf16, #tpu.memory_space<vmem>>, vector<256x128xbf16>,
      %cst_23 = arith.constant 0.000000e+00 : f32
      %43 = vector.broadcast %cst_23 : f32 to vector<1x8x128xf32>
      %c0_24 = arith.constant 0 : index
      %c0_25 = arith.constant 0 : index
      %c0_26 = arith.constant 0 : index
      %44 = vector.load %arg9[%c0_24, %c0_25, %c0_26] : memref<1x8x128xf32, #tpu.memory_space<vmem>>, vector<1x8x128xf32>
      tpu.vector_store %arg9[%c0_24, %c0_25, %c0_26], %43 {strides = array<i32>} : memref<1x8x128xf32, #tpu.memory_space<vmem>>, vector<1x8x128xf32>,
    } else {
    }
    %c2_i32 = arith.constant 2 : i32
    %c0_i32_2 = arith.constant 0 : i32
    %5 = arith.cmpi eq, %c2_i32, %c0_i32_2 : i32
    %c1_i32 = arith.constant 1 : i32
    %6 = arith.select %5, %c1_i32, %c2_i32 : i32
    %7 = arith.remsi %arg1, %6 : i32
    %c0_i32_3 = arith.constant 0 : i32
    %8 = arith.cmpi ne, %7, %c0_i32_3 : i32
    %c0_i32_4 = arith.constant 0 : i32
    %9 = arith.cmpi slt, %7, %c0_i32_4 : i32
    %c0_i32_5 = arith.constant 0 : i32
    %10 = arith.cmpi slt, %6, %c0_i32_5 : i32
    %11 = arith.xori %9, %10 : i1
    %12 = arith.andi %11, %8 : i1
    %13 = arith.addi %7, %6 : i32
    %14 = arith.select %12, %13, %7 : i32
    %c1_i32_6 = arith.constant 1 : i32
    %15 = arith.subi %c1_i32_6, %14 : i32
    %c256_i32 = arith.constant 256 : i32
    %16 = arith.muli %14, %c256_i32 : i32
    %17 = tpu.assume_multiple %16, 256 : i32
    %c256_i32_7 = arith.constant 256 : i32
    %18 = arith.muli %15, %c256_i32_7 : i32
    %19 = tpu.assume_multiple %18, 256 : i32
    %c256_i32_8 = arith.constant 256 : i32
    %20 = arith.muli %arg2, %c256_i32_8 : i32
    %21 = tpu.assume_multiple %20, 256 : i32
    %c0 = arith.constant 0 : index
    %c0_9 = arith.constant 0 : index
    %c0_10 = arith.constant 0 : index
    %22 = vector.load %arg3[%c0, %c0_9, %c0_10] : memref<1x256x256xbf16, #tpu.memory_space<vmem>>, vector<1x256x256xbf16>
    %23 = vector.shape_cast %22 : vector<1x256x256xbf16> to vector<256x256xbf16>
    %24 = arith.index_cast %17 : i32 to index
    %c0_11 = arith.constant 0 : index
    %25 = vector.load %arg10[%24, %c0_11] : memref<512x128xbf16, #tpu.memory_space<vmem>>, vector<256x128xbf16>
    %cst = arith.constant dense<0.000000e+00> : vector<256x128xf32>
    %26 = tpu.matmul %23, %25, %cst {dimension_numbers = #tpu.dot_dimension_numbers<[1], [0], [0], [1], [0, 0, 1, 1], [], []>} : vector<256x256xbf16>, vector<256x128xbf16>, vector<256x128xf32> -> vector<256x128xf32>
    %cst_12 = arith.constant 0.899999976 : f32
    %27 = vector.broadcast %cst_12 : f32 to vector<256x128xf32>
    %28 = arith.mulf %27, %26 : vector<256x128xf32>
    %29 = arith.index_cast %21 : i32 to index
    %c0_13 = arith.constant 0 : index
    %30 = vector.load %arg4[%29, %c0_13] : memref<256x128xf32, #tpu.memory_space<vmem>>, vector<256x128xf32>
    %cst_14 = arith.constant 1.000000e-01 : f32
    %31 = vector.broadcast %cst_14 : f32 to vector<256x128xf32>
    %32 = arith.mulf %31, %30 : vector<256x128xf32>
    %33 = arith.addf %28, %32 : vector<256x128xf32>
    %c2_i32_15 = arith.constant 2 : i32
    %34 = arith.cmpi slt, %arg1, %c2_i32_15 : i32
    %35 = arith.extui %34 : i1 to i32
    %c0_i32_16 = arith.constant 0 : i32
    %36 = arith.cmpi ne, %35, %c0_i32_16 : i32
    scf.if %36 {
      %40 = arith.truncf %33 : vector<256x128xf32> to vector<256x128xbf16>
      %41 = arith.addi %19, %21 : i32
      %42 = arith.index_cast %41 : i32 to index
      %c0_19 = arith.constant 0 : index
      %43 = vector.load %arg10[%42, %c0_19] : memref<512x128xbf16, #tpu.memory_space<vmem>>, vector<256x128xbf16>
      tpu.vector_store %arg10[%42, %c0_19], %40 {strides = array<i32>} : memref<512x128xbf16, #tpu.memory_space<vmem>>, vector<256x128xbf16>,
    } else {
    }
    %c2_i32_17 = arith.constant 2 : i32
    %37 = arith.cmpi eq, %arg1, %c2_i32_17 : i32
    %38 = arith.extui %37 : i1 to i32
    %c0_i32_18 = arith.constant 0 : i32
    %39 = arith.cmpi ne, %38, %c0_i32_18 : i32
    scf.if %39 {
      %40 = arith.truncf %33 : vector<256x128xf32> to vector<256x128xbf16>
      %c0_19 = arith.constant 0 : index
      %c0_20 = arith.constant 0 : index
      %c0_21 = arith.constant 0 : index
      %41 = vector.load %arg8[%c0_19, %c0_20, %c0_21] : memref<1x256x128xbf16, #tpu.memory_space<vmem>>, vector<1x256x128xbf16>
      %42 = vector.shape_cast %41 : vector<1x256x128xbf16> to vector<256x128xbf16>
      %43 = vector.shape_cast %40 : vector<256x128xbf16> to vector<1x256x128xbf16>
      tpu.vector_store %arg8[%c0_19, %c0_20, %c0_21], %43 {strides = array<i32>} : memref<1x256x128xbf16, #tpu.memory_space<vmem>>, vector<1x256x128xbf16>,
      %44 = arith.truncf %33 : vector<256x128xf32> to vector<256x128xbf16>
      %c0_22 = arith.constant 0 : index
      %c0_23 = arith.constant 0 : index
      %45 = vector.load %arg5[%c0_22, %c0_23] : memref<128x128xbf16, #tpu.memory_space<vmem>>, vector<128x128xbf16>
      %cst_24 = arith.constant dense<0.000000e+00> : vector<256x128xf32>
      %46 = tpu.matmul %44, %45, %cst_24 {dimension_numbers = #tpu.dot_dimension_numbers<[1], [0], [0], [1], [0, 0, 1, 1], [], []>} : vector<256x128xbf16>, vector<128x128xbf16>, vector<256x128xf32> -> vector<256x128xf32>
      %c0_25 = arith.constant 0 : index
      %c0_26 = arith.constant 0 : index
      %47 = vector.load %arg6[%c0_25, %c0_26] : memref<1x128xf32, #tpu.memory_space<vmem>>, vector<1x128xf32>
      %48 = vector.broadcast %47 : vector<1x128xf32> to vector<256x128xf32>
      %49 = arith.addf %46, %48 : vector<256x128xf32>
      %50 = math.tanh %49 : vector<256x128xf32>
      %c0_27 = arith.constant 0 : index
      %c0_28 = arith.constant 0 : index
      %51 = vector.load %arg7[%c0_27, %c0_28] : memref<1x128xf32, #tpu.memory_space<vmem>>, vector<1x128xf32>
      %52 = vector.broadcast %51 : vector<1x128xf32> to vector<256x128xf32>
      %53 = arith.mulf %50, %52 : vector<256x128xf32>
      %cst_29 = arith.constant dense<0.000000e+00> : vector<128xf32>
      %54 = vector.multi_reduction <add>, %53, %cst_29 [0] : vector<256x128xf32> to vector<128xf32>
      %55 = vector.shape_cast %54 : vector<128xf32> to vector<1x128xf32>
      %c0_30 = arith.constant 0 : index
      %c0_31 = arith.constant 0 : index
      %c0_32 = arith.constant 0 : index
      %56 = vector.load %arg9[%c0_30, %c0_31, %c0_32] : memref<1x8x128xf32, #tpu.memory_space<vmem>>, vector<1x8x128xf32>
      %57 = vector.shape_cast %55 : vector<1x128xf32> to vector<1x1x128xf32>
      %58 = vector.broadcast %57 : vector<1x1x128xf32> to vector<1x8x128xf32>
      %59 = arith.addf %56, %58 : vector<1x8x128xf32>
      %c0_33 = arith.constant 0 : index
      %c0_34 = arith.constant 0 : index
      %c0_35 = arith.constant 0 : index
      %60 = vector.load %arg9[%c0_33, %c0_34, %c0_35] : memref<1x8x128xf32, #tpu.memory_space<vmem>>, vector<1x8x128xf32>
      tpu.vector_store %arg9[%c0_33, %c0_34, %c0_35], %59 {strides = array<i32>} : memref<1x8x128xf32, #tpu.memory_space<vmem>>, vector<1x8x128xf32>,
    } else {
    }
    return
  }
  func.func @transform_0(%arg0: i32, %arg1: i32, %arg2: i32) -> (i32, i32, i32) {
    %c0_i32 = arith.constant 0 : i32
    %c0_i32_0 = arith.constant 0 : i32
    return %arg0, %arg2, %c0_i32 : i32, i32, i32
  }
  func.func @transform_1(%arg0: i32, %arg1: i32, %arg2: i32) -> (i32, i32) {
    %c0_i32 = arith.constant 0 : i32
    %c0_i32_0 = arith.constant 0 : i32
    %c0_i32_1 = arith.constant 0 : i32
    return %c0_i32, %c0_i32_0 : i32, i32
  }
  func.func @transform_2(%arg0: i32, %arg1: i32, %arg2: i32) -> (i32, i32) {
    %c0_i32 = arith.constant 0 : i32
    %c0_i32_0 = arith.constant 0 : i32
    %c0_i32_1 = arith.constant 0 : i32
    return %c0_i32, %c0_i32_0 : i32, i32
  }
  func.func @transform_3(%arg0: i32, %arg1: i32, %arg2: i32) -> (i32, i32) {
    %c0_i32 = arith.constant 0 : i32
    %c0_i32_0 = arith.constant 0 : i32
    %c0_i32_1 = arith.constant 0 : i32
    return %c0_i32, %c0_i32_0 : i32, i32
  }
  func.func @transform_4(%arg0: i32, %arg1: i32, %arg2: i32) -> (i32, i32) {
    %c0_i32 = arith.constant 0 : i32
    %c0_i32_0 = arith.constant 0 : i32
    %c0_i32_1 = arith.constant 0 : i32
    return %c0_i32, %c0_i32_0 : i32, i32
  }
  func.func @transform_5(%arg0: i32, %arg1: i32, %arg2: i32) -> (i32, i32, i32) {
    %c2_i32 = arith.constant 2 : i32
    %0 = arith.cmpi eq, %arg1, %c2_i32 : i32
    %c0_i32 = arith.constant 0 : i32
    %1 = arith.select %0, %arg2, %c0_i32 : i32
    %c0_i32_0 = arith.constant 0 : i32
    %c0_i32_1 = arith.constant 0 : i32
    return %arg0, %1, %c0_i32_0 : i32, i32, i32
  }
  func.func @transform_6(%arg0: i32, %arg1: i32, %arg2: i32) -> (i32, i32, i32) {
    %c0_i32 = arith.constant 0 : i32
    %c0_i32_0 = arith.constant 0 : i32
    %c0_i32_1 = arith.constant 0 : i32
    return %arg0, %c0_i32, %c0_i32_0 : i32, i32, i32
  }
}

</mosaic_0001>

<llo_original>
// kernel: tpu_custom_call.1
$region0: #{tpu_custom_call.1}
  #allocation0 [shape = 'u32[]', space=smem, size = 0x4, offset = 0x4, fixed_abs, tag = 'smem constant byte address 0x4 - core index']
  #allocation1 [shape = 'u32[72,128]{1,0:T(1,128)}', space=vmem, size = 0x9000, scoped, tag = 'internal scratch']
  #allocation2 [shape = 'bf16[512,128]{1,0:T(8,128)(2,1)}', space=vmem, size = 0x20000, scoped, tag = 'scratch operand']
  %s0 = inlined_call_operand.hbm [shape: bf16[3,256,256], index: 0, kind: input, shape index: {}]
  %s1 = inlined_call_operand.hbm [shape: f32[256,128], index: 1, kind: input, shape index: {}]
  %s2 = inlined_call_operand.hbm [shape: bf16[128,128], index: 2, kind: input, shape index: {}]
  %s3 = inlined_call_operand.vmem [shape: f32[1,128], index: 3, kind: input, shape index: {}]
  %s4 = inlined_call_operand.vmem [shape: f32[1,128], index: 4, kind: input, shape index: {}]
  %s5 = inlined_call_operand.hbm [shape: bf16[3,256,128], index: 5, kind: output, shape index: {0}]
  %s6 = inlined_call_operand.hbm [shape: f32[3,8,128], index: 6, kind: output, shape index: {1}]
  %7 = xla_tuple %s5, %s6
  %s8 = sld [smem:[#allocation0]]
  $region85: #{tpu_custom_call.1} parent=0
    _
  %s10 = ssub.s32 1, %s8
  %s11 = scalar_select 0, %s10, %s8
  $region1: #{tpu_custom_call.1} parent=0
    #allocation3 [shape = 'u8[262144]{0}', space=vmem, size = 0x40000, scoped, tag = 'input window, operand 0']
    #allocation4 [shape = 's32[2]{0}', space=sflag, size = 0x8, scoped, tag = 'scoped memory for tpu_custom_call.1']
    #allocation5 [shape = 's32[2]{0}', space=sflag, size = 0x8, scoped, tag = 'scoped memory for tpu_custom_call.1']
    #allocation6 [shape = 'u8[131072]{0}', space=vmem, size = 0x20000, scoped, tag = 'input window, operand 1, single buffered']
    #allocation7 [shape = 's32[1]{0}', space=sflag, size = 0x4, scoped, tag = 'scoped memory for tpu_custom_call.1']
    #allocation8 [shape = 'u8[32768]{0}', space=vmem, size = 0x8000, scoped, tag = 'input window, operand 2, single buffered']
    #allocation9 [shape = 'u8[131072]{0}', space=vmem, size = 0x20000, scoped, tag = 'output window, operand 0']
    #allocation10 [shape = 'u8[8192]{0}', space=vmem, size = 0x2000, scoped, tag = 'output window, operand 1']
    #allocation11 [shape = 's32[2]{0}', space=sflag, size = 0x8, scoped, tag = 'scoped memory for tpu_custom_call.1']
    %12 = vsyncpa [#allocation4], 0
    %s13 = scalar_lea.sflag [#allocation4], 1
    %14 = vsyncpa %s13, 0
    %15 = vsyncpa [#allocation7], 0
    %16 = vsyncpa [#allocation5], 0
    %s17 = scalar_lea.sflag [#allocation5], 1
    %18 = vsyncpa %s17, 0
    %19 = vsyncpa [#allocation11], 0
    %s20 = scalar_lea.sflag [#allocation11], 1
    %21 = vsyncpa %s20, 0
    loop: start=0, step=1, limit=11
    $region2: #{tpu_custom_call.1} parent=1 // loop_pre_header
      _
    $region3: #{tpu_custom_call.1} parent=1 // loop_header
      %s23 = sphi 0, %s27
      %p24 = scmp.ge.s32.totalorder %s23, 11
      %s30 = sphi 0, %s49
      %s31 = sphi 0, %s45
      %s32 = sphi 0, %s41
      %s33 = sphi 0, %s30
      %s34 = sphi 0, %s31
      %s35 = sphi 0, %s32
      %s36 = sphi 0, %s33
      %s37 = sphi 0, %s34
      %s38 = sphi 0, %s35
      %s54 = sphi 0, %s56
      %s57 = sphi 0, %s54
      %s58 = sphi 0, %s57
      %s74 = sphi 0, %s58
      %s78 = sphi 0, %s78
      %s80 = sphi 0, %s78
      %s81 = sphi 0, %s80
      %s95 = sphi 0, %s81
      %s99 = sphi 0, %s99
      %s101 = sphi 0, %s99
      %s102 = sphi 0, %s101
      %s116 = sphi 0, %s102
      %s120 = sphi 0, %s120
      %s122 = sphi 0, %s120
      %s123 = sphi 0, %s122
      %s137 = sphi 0, %s123
      %s141 = sphi 0, %s141
      %s143 = sphi 0, %s141
      %s144 = sphi 0, %s143
      %s158 = sphi 0, %s144
      %s170 = sphi 0, %s172
      %s173 = sphi 0, %s170
      %s174 = sphi 0, %s173
      %s190 = sphi 0, %s174
      %s196 = sphi 0, %s198
      %s199 = sphi 0, %s196
      %s200 = sphi 0, %s199
      %s216 = sphi 0, %s200
    $region4: #{tpu_custom_call.1} parent=1 // loop_header_branch
      %26 = sbr.rel (%p24) target = $region8
    $region5: #{tpu_custom_call.1} parent=1 // loop_body
      %s28 = ssub.s32 %s23, 1
      %s29 = ssub.s32 %s23, 2
      %s39 = sadd.s32 1, %s32
      %p40 = scmp.ge.s32.totalorder %s39, 1
      %s41 = scalar_select %p40, 0, %s39
      %s42 = sadd.s32 1, %s31
      %s43 = scalar_select %p40, %s42, %s31
      %p44 = scmp.ge.s32.totalorder %s43, 3
      %s45 = scalar_select %p44, 0, %s43
      %s46 = sadd.s32 1, %s30
      %s47 = scalar_select %p44, %s46, %s30
      %p48 = scmp.ge.s32.totalorder %s47, 3
      %s49 = scalar_select %p48, 0, %s47
      %s50 = ssub.s32 %s30, %s49
      %s51 = ssub.s32 %s32, %s41
      %s52 = sor.u32 %s50, %s51
      %p53 = scmp.eq.s32.totalorder %s52, 0
      %s55 = sadd.s32 %s54, 1
      %s56 = scalar_select %p53, %s54, %s55
      %p59 = pneg %p53
      %p60 = scmp.eq.s32.totalorder %s23, 8
      %p61 = por %p59, %p60
      %p62 = scmp.ne.s32.totalorder %s54, %s57
      %p63 = scmp.eq.s32.totalorder %s23, 0
      %p64 = por %p62, %p63
      %p65 = scmp.ne.s32.totalorder %s54, %s57
      %p66 = scmp.eq.s32.totalorder %s28, 8
      %p67 = por %p65, %p66
      %p68 = scmp.ne.s32.totalorder %s57, %s58
      %p69 = scmp.eq.s32.totalorder %s28, 0
      %p70 = por %p68, %p69
      %p71 = scmp.ne.s32.totalorder %s57, %s58
      %p72 = scmp.eq.s32.totalorder %s29, 8
      %p73 = por %p71, %p72
      %p75 = scmp.ne.s32.totalorder %s58, %s74
      %p76 = scmp.eq.s32.totalorder %s29, 0
      %p77 = por %p75, %p76
      %s79 = sadd.s32 %s78, 1
      %p82 = scmp.eq.s32.totalorder %s23, 8
      %p83 = scmp.ne.s32.totalorder %s78, %s80
      %p84 = scmp.eq.s32.totalorder %s23, 0
      %p85 = por %p83, %p84
      %p86 = scmp.ne.s32.totalorder %s78, %s80
      %p87 = scmp.eq.s32.totalorder %s28, 8
      %p88 = por %p86, %p87
      %p89 = scmp.ne.s32.totalorder %s80, %s81
      %p90 = scmp.eq.s32.totalorder %s28, 0
      %p91 = por %p89, %p90
      %p92 = scmp.ne.s32.totalorder %s80, %s81
      %p93 = scmp.eq.s32.totalorder %s29, 8
      %p94 = por %p92, %p93
      %p96 = scmp.ne.s32.totalorder %s81, %s95
      %p97 = scmp.eq.s32.totalorder %s29, 0
      %p98 = por %p96, %p97
      %s100 = sadd.s32 %s99, 1
      %p103 = scmp.eq.s32.totalorder %s23, 8
      %p104 = scmp.ne.s32.totalorder %s99, %s101
      %p105 = scmp.eq.s32.totalorder %s23, 0
      %p106 = por %p104, %p105
      %p107 = scmp.ne.s32.totalorder %s99, %s101
      %p108 = scmp.eq.s32.totalorder %s28, 8
      %p109 = por %p107, %p108
      %p110 = scmp.ne.s32.totalorder %s101, %s102
      %p111 = scmp.eq.s32.totalorder %s28, 0
      %p112 = por %p110, %p111
      %p113 = scmp.ne.s32.totalorder %s101, %s102
      %p114 = scmp.eq.s32.totalorder %s29, 8
      %p115 = por %p113, %p114
      %p117 = scmp.ne.s32.totalorder %s102, %s116
      %p118 = scmp.eq.s32.totalorder %s29, 0
      %p119 = por %p117, %p118
      %s121 = sadd.s32 %s120, 1
      %p124 = scmp.eq.s32.totalorder %s23, 8
      %p125 = scmp.ne.s32.totalorder %s120, %s122
      %p126 = scmp.eq.s32.totalorder %s23, 0
      %p127 = por %p125, %p126
      %p128 = scmp.ne.s32.totalorder %s120, %s122
      %p129 = scmp.eq.s32.totalorder %s28, 8
      %p130 = por %p128, %p129
      %p131 = scmp.ne.s32.totalorder %s122, %s123
      %p132 = scmp.eq.s32.totalorder %s28, 0
      %p133 = por %p131, %p132
      %p134 = scmp.ne.s32.totalorder %s122, %s123
      %p135 = scmp.eq.s32.totalorder %s29, 8
      %p136 = por %p134, %p135
      %p138 = scmp.ne.s32.totalorder %s123, %s137
      %p139 = scmp.eq.s32.totalorder %s29, 0
      %p140 = por %p138, %p139
      %s142 = sadd.s32 %s141, 1
      %p145 = scmp.eq.s32.totalorder %s23, 8
      %p146 = scmp.ne.s32.totalorder %s141, %s143
      %p147 = scmp.eq.s32.totalorder %s23, 0
      %p148 = por %p146, %p147
      %p149 = scmp.ne.s32.totalorder %s141, %s143
      %p150 = scmp.eq.s32.totalorder %s28, 8
      %p151 = por %p149, %p150
      %p152 = scmp.ne.s32.totalorder %s143, %s144
      %p153 = scmp.eq.s32.totalorder %s28, 0
      %p154 = por %p152, %p153
      %p155 = scmp.ne.s32.totalorder %s143, %s144
      %p156 = scmp.eq.s32.totalorder %s29, 8
      %p157 = por %p155, %p156
      %p159 = scmp.ne.s32.totalorder %s144, %s158
      %p160 = scmp.eq.s32.totalorder %s29, 0
      %p161 = por %p159, %p160
      %p162 = scmp.eq.s32.totalorder %s31, 2
      %s163 = scalar_select %p162, %s32, 0
      %p164 = scmp.eq.s32.totalorder %s45, 2
      %s165 = scalar_select %p164, %s41, 0
      %s166 = ssub.s32 %s30, %s49
      %s167 = ssub.s32 %s163, %s165
      %s168 = sor.u32 %s166, %s167
      %p169 = scmp.eq.s32.totalorder %s168, 0
      %s171 = sadd.s32 %s170, 1
      %s172 = scalar_select %p169, %s170, %s171
      %p175 = pneg %p169
      %p176 = scmp.eq.s32.totalorder %s23, 8
      %p177 = por %p175, %p176
      %p178 = scmp.ne.s32.totalorder %s170, %s173
      %p179 = scmp.eq.s32.totalorder %s23, 0
      %p180 = por %p178, %p179
      %p181 = scmp.ne.s32.totalorder %s170, %s173
      %p182 = scmp.eq.s32.totalorder %s28, 8
      %p183 = por %p181, %p182
      %p184 = scmp.ne.s32.totalorder %s173, %s174
      %p185 = scmp.eq.s32.totalorder %s28, 0
      %p186 = por %p184, %p185
      %p187 = scmp.ne.s32.totalorder %s173, %s174
      %p188 = scmp.eq.s32.totalorder %s29, 8
      %p189 = por %p187, %p188
      %p191 = scmp.ne.s32.totalorder %s174, %s190
      %p192 = scmp.eq.s32.totalorder %s29, 0
      %p193 = por %p191, %p192
      %s194 = ssub.s32 %s30, %s49
      %p195 = scmp.eq.s32.totalorder %s194, 0
      %s197 = sadd.s32 %s196, 1
      %s198 = scalar_select %p195, %s196, %s197
      %p201 = pneg %p195
      %p202 = scmp.eq.s32.totalorder %s23, 8
      %p203 = por %p201, %p202
      %p204 = scmp.ne.s32.totalorder %s196, %s199
      %p205 = scmp.eq.s32.totalorder %s23, 0
      %p206 = por %p204, %p205
      %p207 = scmp.ne.s32.totalorder %s196, %s199
      %p208 = scmp.eq.s32.totalorder %s28, 8
      %p209 = por %p207, %p208
      %p210 = scmp.ne.s32.totalorder %s199, %s200
      %p211 = scmp.eq.s32.totalorder %s28, 0
      %p212 = por %p210, %p211
      %p213 = scmp.ne.s32.totalorder %s199, %s200
      %p214 = scmp.eq.s32.totalorder %s29, 8
      %p215 = por %p213, %p214
      %p217 = scmp.ne.s32.totalorder %s200, %s216
      %p218 = scmp.eq.s32.totalorder %s29, 0
      %p219 = por %p217, %p218
      %p220 = scmp.le.s32.totalorder 1, %s23
      %p221 = scmp.lt.s32.totalorder %s23, 10
      %p222 = pnand %p220, %p221
      %p223 = pneg %p222
      // Predicated region
      $region9: #{tpu_custom_call.1} parent=5 // pred_check
        _
      $region10: #{tpu_custom_call.1} parent=5 // pred_check_branch
        %225 = sbr.rel (%p222) target = $region12
      $region11: #{tpu_custom_call.1} parent=5 // pred_region
        %s226 = ssub.s32 %s23, 1
        // Predicated region
        $region13: #{tpu_custom_call.1} parent=11 // pred_check
          %p227 = pneg %p91
        $region14: #{tpu_custom_call.1} parent=11 // pred_check_branch
          %229 = sbr.rel (%p227) target = $region16
        $region15: #{tpu_custom_call.1} parent=11 // pred_region
          %231 = vsyncadd [#allocation7], 0
          %s232 = sshll.u32 %s1, 4
          %s233 = int_to_ptr.hbm [resolvable:$true] %s232
          %s234 = sshll.u32 [#allocation6], 4
          %s235 = int_to_ptr.vmem [resolvable:$true] %s234
          %240 = dma.hbm_to_vmem [thread:$0]  %s233, 4096, %s235, [#allocation7], 128, 128, 8
        $region16: #{tpu_custom_call.1} parent=11 // pred_fallthru
          _
        // Predicated region
        $region17: #{tpu_custom_call.1} parent=11 // pred_check
          %p241 = pneg %p112
        $region18: #{tpu_custom_call.1} parent=11 // pred_check_branch
          %243 = sbr.rel (%p241) target = $region20
        $region19: #{tpu_custom_call.1} parent=11 // pred_region
          %245 = vsyncadd [#allocation7], 0
          %s246 = sshll.u32 %s2, 4
          %s247 = int_to_ptr.hbm [resolvable:$true] %s246
          %s248 = sshll.u32 [#allocation8], 4
          %s249 = int_to_ptr.vmem [resolvable:$true] %s248
          %254 = dma.hbm_to_vmem [thread:$0]  %s247, 1024, %s249, [#allocation7], 64, 64, 4
        $region20: #{tpu_custom_call.1} parent=11 // pred_fallthru
          _
        // Predicated region
        $region21: #{tpu_custom_call.1} parent=11 // pred_check
          %p255 = pneg %p133
        $region22: #{tpu_custom_call.1} parent=11 // pred_check_branch
          %257 = sbr.rel (%p255) target = $region24
        $region23: #{tpu_custom_call.1} parent=11 // pred_region
          _
        $region24: #{tpu_custom_call.1} parent=11 // pred_fallthru
          _
        // Predicated region
        $region25: #{tpu_custom_call.1} parent=11 // pred_check
          %p258 = pneg %p154
        $region26: #{tpu_custom_call.1} parent=11 // pred_check_branch
          %260 = sbr.rel (%p258) target = $region28
        $region27: #{tpu_custom_call.1} parent=11 // pred_region
          _
        $region28: #{tpu_custom_call.1} parent=11 // pred_fallthru
          _
      $region12: #{tpu_custom_call.1} parent=5 // pred_fallthru
        _
      %p261 = scmp.lt.s32.totalorder %s23, 9
      // Predicated region
      $region29: #{tpu_custom_call.1} parent=5 // pred_check
        %p262 = pneg %p261
      $region30: #{tpu_custom_call.1} parent=5 // pred_check_branch
        %264 = sbr.rel (%p262) target = $region32
      $region31: #{tpu_custom_call.1} parent=5 // pred_region
        // Predicated region
        $region33: #{tpu_custom_call.1} parent=31 // pred_check
          %p265 = pneg %p64
        $region34: #{tpu_custom_call.1} parent=31 // pred_check_branch
          %267 = sbr.rel (%p265) target = $region36
        $region35: #{tpu_custom_call.1} parent=31 // pred_region
          %s268 = sand.u32 %s54, 1
          %s269 = scalar_lea.sflag [#allocation4], %s268
          %s270 = sand.u32 %s54, 1
          %s271 = smul.addr %s270, 256
          %s272 = scalar_lea.vmem [#allocation3], %s271
          %s273 = smul.u32 32, %s32
          %275 = vsyncadd %s269, 0
          %s276 = smul.addr %s273, 2
          %s277 = smul.addr %s30, 64
          %s278 = sadd.s32 %s276, %s277
          %s279 = smul.addr %s278, 4
          %s280 = scalar_lea.hbm %s0, %s279
          %s281 = sshll.u32 %s280, 4
          %s282 = int_to_ptr.hbm [resolvable:$true] %s281
          %s283 = sshll.u32 %s272, 4
          %s284 = int_to_ptr.vmem [resolvable:$true] %s283
          %289 = dma.hbm_to_vmem [thread:$0]  %s282, 4096, %s284, %s269, 128, 128, 8
        $region36: #{tpu_custom_call.1} parent=31 // pred_fallthru
          _
      $region32: #{tpu_custom_call.1} parent=5 // pred_fallthru
        _
      %p290 = scmp.le.s32.totalorder 1, %s23
      %p291 = scmp.lt.s32.totalorder %s23, 10
      %p292 = pnand %p290, %p291
      %p293 = pneg %p292
      // Predicated region
      $region37: #{tpu_custom_call.1} parent=5 // pred_check
        _
      $region38: #{tpu_custom_call.1} parent=5 // pred_check_branch
        %295 = sbr.rel (%p292) target = $region40
      $region39: #{tpu_custom_call.1} parent=5 // pred_region
        %s296 = ssub.s32 %s23, 1
        %s297 = sand.u32 %s57, 1
        %s298 = scalar_lea.sflag [#allocation4], %s297
        %s299 = sand.u32 %s57, 1
        %s300 = smul.addr %s299, 256
        %s301 = scalar_lea.vmem [#allocation3], %s300
        // Predicated region
        $region41: #{tpu_custom_call.1} parent=39 // pred_check
          %p302 = pneg %p70
        $region42: #{tpu_custom_call.1} parent=39 // pred_check_branch
          %304 = sbr.rel (%p302) target = $region44
        $region43: #{tpu_custom_call.1} parent=39 // pred_region
          %306 = dma.done %s298, 4096
        $region44: #{tpu_custom_call.1} parent=39 // pred_fallthru
          _
        // Predicated region
        $region45: #{tpu_custom_call.1} parent=39 // pred_check
          %p307 = pneg %p91
        $region46: #{tpu_custom_call.1} parent=39 // pred_check_branch
          %309 = sbr.rel (%p307) target = $region48
        $region47: #{tpu_custom_call.1} parent=39 // pred_region
          %311 = dma.done [#allocation7], 4096
        $region48: #{tpu_custom_call.1} parent=39 // pred_fallthru
          _
        // Predicated region
        $region49: #{tpu_custom_call.1} parent=39 // pred_check
          %p312 = pneg %p112
        $region50: #{tpu_custom_call.1} parent=39 // pred_check_branch
          %314 = sbr.rel (%p312) target = $region52
        $region51: #{tpu_custom_call.1} parent=39 // pred_region
          %316 = dma.done [#allocation7], 1024
        $region52: #{tpu_custom_call.1} parent=39 // pred_fallthru
          _
        %s317 = sand.u32 %s57, 1
        %s318 = scalar_lea.sflag [#allocation4], %s317
        %s319 = sand.u32 %s57, 1
        %s320 = smul.addr %s319, 256
        %s321 = scalar_lea.vmem [#allocation3], %s320
        %p322 = pneg %p70
        %p323 = pneg %p67
        %p324 = pneg %p91
        %p325 = pneg %p88
        %p326 = pneg %p112
        %p327 = pneg %p109
        %p328 = pneg %p133
        %p329 = pneg %p130
        %p330 = pneg %p154
        %p331 = pneg %p151
        %p332 = pneg %p186
        %p333 = pneg %p183
        %s334 = sand.u32 %s173, 1
        %s335 = scalar_lea.sflag [#allocation5], %s334
        %s336 = sand.u32 %s173, 1
        %s337 = smul.addr %s336, 128
        %s338 = scalar_lea.vmem [#allocation9], %s337
        %p339 = pneg %p212
        %p340 = pneg %p209
        %s341 = sand.u32 %s199, 1
        %s342 = scalar_lea.sflag [#allocation11], %s341
        %s343 = sand.u32 %s199, 1
        %s344 = smul.addr %s343, 8
        %s345 = scalar_lea.vmem [#allocation10], %s344
        %s346 = smul.u32 32, %s35
        %p347 = scmp.eq.s32.totalorder %s34, 2
        %s348 = scalar_select %p347, %s35, 0
        %s349 = smul.u32 32, %s348
        %p350 = scmp.eq.s32.totalorder %s34, 0
        %p351 = scmp.eq.s32.totalorder %s35, 0
        %p352 = pnand %p350, %p351
        %p353 = pneg %p352
        // Predicated region
        $region53: #{tpu_custom_call.1} parent=39 // pred_check
          _
        $region54: #{tpu_custom_call.1} parent=39 // pred_check_branch
          %355 = sbr.rel (%p352) target = $region56
        $region55: #{tpu_custom_call.1} parent=39 // pred_region
          %v356 = vld [vmem:[#allocation6] sm:$0xff]
          %v357 = vld [vmem:[#allocation6 + $0x8] sm:$0xff]
          %v358 = vld [vmem:[#allocation6 + $0x10] sm:$0xff]
          %v359 = vld [vmem:[#allocation6 + $0x18] sm:$0xff]
          %v360 = vld [vmem:[#allocation6 + $0x20] sm:$0xff]
          %v361 = vld [vmem:[#allocation6 + $0x28] sm:$0xff]
          %v362 = vld [vmem:[#allocation6 + $0x30] sm:$0xff]
          %v363 = vld [vmem:[#allocation6 + $0x38] sm:$0xff]
          %v364 = vld [vmem:[#allocation6 + $0x40] sm:$0xff]
          %v365 = vld [vmem:[#allocation6 + $0x48] sm:$0xff]
          %v366 = vld [vmem:[#allocation6 + $0x50] sm:$0xff]
          %v367 = vld [vmem:[#allocation6 + $0x58] sm:$0xff]
          %v368 = vld [vmem:[#allocation6 + $0x60] sm:$0xff]
          %v369 = vld [vmem:[#allocation6 + $0x68] sm:$0xff]
          %v370 = vld [vmem:[#allocation6 + $0x70] sm:$0xff]
          %v371 = vld [vmem:[#allocation6 + $0x78] sm:$0xff]
          %v372 = vld [vmem:[#allocation6 + $0x80] sm:$0xff]
          %v373 = vld [vmem:[#allocation6 + $0x88] sm:$0xff]
          %v374 = vld [vmem:[#allocation6 + $0x90] sm:$0xff]
          %v375 = vld [vmem:[#allocation6 + $0x98] sm:$0xff]
          %v376 = vld [vmem:[#allocation6 + $0xa0] sm:$0xff]
          %v377 = vld [vmem:[#allocation6 + $0xa8] sm:$0xff]
          %v378 = vld [vmem:[#allocation6 + $0xb0] sm:$0xff]
          %v379 = vld [vmem:[#allocation6 + $0xb8] sm:$0xff]
          %v380 = vld [vmem:[#allocation6 + $0xc0] sm:$0xff]
          %v381 = vld [vmem:[#allocation6 + $0xc8] sm:$0xff]
          %v382 = vld [vmem:[#allocation6 + $0xd0] sm:$0xff]
          %v383 = vld [vmem:[#allocation6 + $0xd8] sm:$0xff]
          %v384 = vld [vmem:[#allocation6 + $0xe0] sm:$0xff]
          %v385 = vld [vmem:[#allocation6 + $0xe8] sm:$0xff]
          %v386 = vld [vmem:[#allocation6 + $0xf0] sm:$0xff]
          %v387 = vld [vmem:[#allocation6 + $0xf8] sm:$0xff]
          %v388 = vpack.c.bf16 %v356, %v356
          %v389 = vpack.c.bf16 %v357, %v357
          %v390 = vpack.c.bf16 %v358, %v358
          %v391 = vpack.c.bf16 %v359, %v359
          %v392 = vpack.c.bf16 %v360, %v360
          %v393 = vpack.c.bf16 %v361, %v361
          %v394 = vpack.c.bf16 %v362, %v362
          %v395 = vpack.c.bf16 %v363, %v363
          %v396 = vpack.c.bf16 %v364, %v364
          %v397 = vpack.c.bf16 %v365, %v365
          %v398 = vpack.c.bf16 %v366, %v366
          %v399 = vpack.c.bf16 %v367, %v367
          %v400 = vpack.c.bf16 %v368, %v368
          %v401 = vpack.c.bf16 %v369, %v369
          %v402 = vpack.c.bf16 %v370, %v370
          %v403 = vpack.c.bf16 %v371, %v371
          %v404 = vpack.c.bf16 %v372, %v372
          %v405 = vpack.c.bf16 %v373, %v373
          %v406 = vpack.c.bf16 %v374, %v374
          %v407 = vpack.c.bf16 %v375, %v375
          %v408 = vpack.c.bf16 %v376, %v376
          %v409 = vpack.c.bf16 %v377, %v377
          %v410 = vpack.c.bf16 %v378, %v378
          %v411 = vpack.c.bf16 %v379, %v379
          %v412 = vpack.c.bf16 %v380, %v380
          %v413 = vpack.c.bf16 %v381, %v381
          %v414 = vpack.c.bf16 %v382, %v382
          %v415 = vpack.c.bf16 %v383, %v383
          %v416 = vpack.c.bf16 %v384, %v384
          %v417 = vpack.c.bf16 %v385, %v385
          %v418 = vpack.c.bf16 %v386, %v386
          %v419 = vpack.c.bf16 %v387, %v387
          %420 = vst [vmem:[#allocation2] sm:$0xf] %v388
          %421 = vst [vmem:[#allocation2 + $0x4] sm:$0xf] %v389
          %422 = vst [vmem:[#allocation2 + $0x8] sm:$0xf] %v390
          %423 = vst [vmem:[#allocation2 + $0xc] sm:$0xf] %v391
          %424 = vst [vmem:[#allocation2 + $0x10] sm:$0xf] %v392
          %425 = vst [vmem:[#allocation2 + $0x14] sm:$0xf] %v393
          %426 = vst [vmem:[#allocation2 + $0x18] sm:$0xf] %v394
          %427 = vst [vmem:[#allocation2 + $0x1c] sm:$0xf] %v395
          %428 = vst [vmem:[#allocation2 + $0x20] sm:$0xf] %v396
          %429 = vst [vmem:[#allocation2 + $0x24] sm:$0xf] %v397
          %430 = vst [vmem:[#allocation2 + $0x28] sm:$0xf] %v398
          %431 = vst [vmem:[#allocation2 + $0x2c] sm:$0xf] %v399
          %432 = vst [vmem:[#allocation2 + $0x30] sm:$0xf] %v400
          %433 = vst [vmem:[#allocation2 + $0x34] sm:$0xf] %v401
          %434 = vst [vmem:[#allocation2 + $0x38] sm:$0xf] %v402
          %435 = vst [vmem:[#allocation2 + $0x3c] sm:$0xf] %v403
          %436 = vst [vmem:[#allocation2 + $0x40] sm:$0xf] %v404
          %437 = vst [vmem:[#allocation2 + $0x44] sm:$0xf] %v405
          %438 = vst [vmem:[#allocation2 + $0x48] sm:$0xf] %v406
          %439 = vst [vmem:[#allocation2 + $0x4c] sm:$0xf] %v407
          %440 = vst [vmem:[#allocation2 + $0x50] sm:$0xf] %v408
          %441 = vst [vmem:[#allocation2 + $0x54] sm:$0xf] %v409
          %442 = vst [vmem:[#allocation2 + $0x58] sm:$0xf] %v410
          %443 = vst [vmem:[#allocation2 + $0x5c] sm:$0xf] %v411
          %444 = vst [vmem:[#allocation2 + $0x60] sm:$0xf] %v412
          %445 = vst [vmem:[#allocation2 + $0x64] sm:$0xf] %v413
          %446 = vst [vmem:[#allocation2 + $0x68] sm:$0xf] %v414
          %447 = vst [vmem:[#allocation2 + $0x6c] sm:$0xf] %v415
          %448 = vst [vmem:[#allocation2 + $0x70] sm:$0xf] %v416
          %449 = vst [vmem:[#allocation2 + $0x74] sm:$0xf] %v417
          %450 = vst [vmem:[#allocation2 + $0x78] sm:$0xf] %v418
          %451 = vst [vmem:[#allocation2 + $0x7c] sm:$0xf] %v419
          %452 = vst [vmem:[%s345] sm:$0xff] 0.0
        $region56: #{tpu_custom_call.1} parent=39 // pred_fallthru
          _
        %p453 = scmp.lt.s32.totalorder %s34, 0
        %s454 = ssub.s32 0, %s34
        %s455 = scalar_select %p453, %s454, %s34
        %s456 = sand.u32 %s455, 1
        %s457 = ssub.s32 0, %s456
        %s458 = scalar_select %p453, %s457, %s456
        %p459 = scmp.ne.s32.totalorder %s458, 0
        %p460 = scmp.lt.s32.totalorder %s458, 0
        %p461 = pnand %p460, %p459
        %p462 = pneg %p461
        %s463 = sadd.s32 %s458, 2
        %s464 = scalar_select %p462, %s463, %s458
        %s465 = ssub.s32 1, %s464
        %s466 = smul.u32 %s464, 256
        %s467 = smul.u32 %s465, 256
        %s468 = smul.u32 %s35, 256
        %v469 = vld [vmem:[%s301] sm:$0xff]
        %v470 = vld [vmem:[%s301 + $0x8] sm:$0xff]
        %v471 = vld [vmem:[%s301 + $0x10] sm:$0xff]
        %v472 = vld [vmem:[%s301 + $0x18] sm:$0xff]
        %v473 = vld [vmem:[%s301 + $0x20] sm:$0xff]
        %v474 = vld [vmem:[%s301 + $0x28] sm:$0xff]
        %v475 = vld [vmem:[%s301 + $0x30] sm:$0xff]
        %v476 = vld [vmem:[%s301 + $0x38] sm:$0xff]
        %v477 = vld [vmem:[%s301 + $0x40] sm:$0xff]
        %v478 = vld [vmem:[%s301 + $0x48] sm:$0xff]
        %v479 = vld [vmem:[%s301 + $0x50] sm:$0xff]
        %v480 = vld [vmem:[%s301 + $0x58] sm:$0xff]
        %v481 = vld [vmem:[%s301 + $0x60] sm:$0xff]
        %v482 = vld [vmem:[%s301 + $0x68] sm:$0xff]
        %v483 = vld [vmem:[%s301 + $0x70] sm:$0xff]
        %v484 = vld [vmem:[%s301 + $0x78] sm:$0xff]
        %v485 = vld [vmem:[%s301 + $0x80] sm:$0xff]
        %v486 = vld [vmem:[%s301 + $0x88] sm:$0xff]
        %v487 = vld [vmem:[%s301 + $0x90] sm:$0xff]
        %v488 = vld [vmem:[%s301 + $0x98] sm:$0xff]
        %v489 = vld [vmem:[%s301 + $0xa0] sm:$0xff]
        %v490 = vld [vmem:[%s301 + $0xa8] sm:$0xff]
        %v491 = vld [vmem:[%s301 + $0xb0] sm:$0xff]
        %v492 = vld [vmem:[%s301 + $0xb8] sm:$0xff]
        %v493 = vld [vmem:[%s301 + $0xc0] sm:$0xff]
        %v494 = vld [vmem:[%s301 + $0xc8] sm:$0xff]
        %v495 = vld [vmem:[%s301 + $0xd0] sm:$0xff]
        %v496 = vld [vmem:[%s301 + $0xd8] sm:$0xff]
        %v497 = vld [vmem:[%s301 + $0xe0] sm:$0xff]
        %v498 = vld [vmem:[%s301 + $0xe8] sm:$0xff]
        %v499 = vld [vmem:[%s301 + $0xf0] sm:$0xff]
        %v500 = vld [vmem:[%s301 + $0xf8] sm:$0xff]
        %s501 = sshra.s32 %s466, 3
        %s502 = sand.u32 %s466, 7
        %s503 = smul.addr %s501, 4
        %s504 = scalar_lea.vmem [#allocation2], %s503
        %v505 = vld [vmem:[%s504] sm:$0xf]
        %v506 = vld [vmem:[%s504 + $0x4] sm:$0xf]
        %v507 = vld [vmem:[%s504 + $0x8] sm:$0xf]
        %v508 = vld [vmem:[%s504 + $0xc] sm:$0xf]
        %v509 = vld [vmem:[%s504 + $0x10] sm:$0xf]
        %v510 = vld [vmem:[%s504 + $0x14] sm:$0xf]
        %v511 = vld [vmem:[%s504 + $0x18] sm:$0xf]
        %v512 = vld [vmem:[%s504 + $0x1c] sm:$0xf]
        %v513 = vld [vmem:[%s504 + $0x20] sm:$0xf]
        %v514 = vld [vmem:[%s504 + $0x24] sm:$0xf]
        %v515 = vld [vmem:[%s504 + $0x28] sm:$0xf]
        %v516 = vld [vmem:[%s504 + $0x2c] sm:$0xf]
        %v517 = vld [vmem:[%s504 + $0x30] sm:$0xf]
        %v518 = vld [vmem:[%s504 + $0x34] sm:$0xf]
        %v519 = vld [vmem:[%s504 + $0x38] sm:$0xf]
        %v520 = vld [vmem:[%s504 + $0x3c] sm:$0xf]
        %v521 = vld [vmem:[%s504 + $0x40] sm:$0xf]
        %v522 = vld [vmem:[%s504 + $0x44] sm:$0xf]
        %v523 = vld [vmem:[%s504 + $0x48] sm:$0xf]
        %v524 = vld [vmem:[%s504 + $0x4c] sm:$0xf]
        %v525 = vld [vmem:[%s504 + $0x50] sm:$0xf]
        %v526 = vld [vmem:[%s504 + $0x54] sm:$0xf]
        %v527 = vld [vmem:[%s504 + $0x58] sm:$0xf]
        %v528 = vld [vmem:[%s504 + $0x5c] sm:$0xf]
        %v529 = vld [vmem:[%s504 + $0x60] sm:$0xf]
        %v530 = vld [vmem:[%s504 + $0x64] sm:$0xf]
        %v531 = vld [vmem:[%s504 + $0x68] sm:$0xf]
        %v532 = vld [vmem:[%s504 + $0x6c] sm:$0xf]
        %v533 = vld [vmem:[%s504 + $0x70] sm:$0xf]
        %v534 = vld [vmem:[%s504 + $0x74] sm:$0xf]
        %v535 = vld [vmem:[%s504 + $0x78] sm:$0xf]
        %v536 = vld [vmem:[%s504 + $0x7c] sm:$0xf]
        %v569 = vunpack.c.l.b16 %v469
        %v570 = vunpack.c.h.b16 %v469
        %v571 = vunpack.c.l.b16 %v470
        %v572 = vunpack.c.h.b16 %v470
        %v573 = vunpack.c.l.b16 %v471
        %v574 = vunpack.c.h.b16 %v471
        %v575 = vunpack.c.l.b16 %v472
        %v576 = vunpack.c.h.b16 %v472
        %v577 = vunpack.c.l.b16 %v473
        %v578 = vunpack.c.h.b16 %v473
        %v579 = vunpack.c.l.b16 %v474
        %v580 = vunpack.c.h.b16 %v474
        %v581 = vunpack.c.l.b16 %v475
        %v582 = vunpack.c.h.b16 %v475
        %v583 = vunpack.c.l.b16 %v476
        %v584 = vunpack.c.h.b16 %v476
        %v585 = vunpack.c.l.b16 %v477
        %v586 = vunpack.c.h.b16 %v477
        %v587 = vunpack.c.l.b16 %v478
        %v588 = vunpack.c.h.b16 %v478
        %v589 = vunpack.c.l.b16 %v479
        %v590 = vunpack.c.h.b16 %v479
        %v591 = vunpack.c.l.b16 %v480
        %v592 = vunpack.c.h.b16 %v480
        %v593 = vunpack.c.l.b16 %v481
        %v594 = vunpack.c.h.b16 %v481
        %v595 = vunpack.c.l.b16 %v482
        %v596 = vunpack.c.h.b16 %v482
        %v597 = vunpack.c.l.b16 %v483
        %v598 = vunpack.c.h.b16 %v483
        %v599 = vunpack.c.l.b16 %v484
        %v600 = vunpack.c.h.b16 %v484
        %v601 = vunpack.c.l.b16 %v485
        %v602 = vunpack.c.h.b16 %v485
        %v603 = vunpack.c.l.b16 %v486
        %v604 = vunpack.c.h.b16 %v486
        %v605 = vunpack.c.l.b16 %v487
        %v606 = vunpack.c.h.b16 %v487
        %v607 = vunpack.c.l.b16 %v488
        %v608 = vunpack.c.h.b16 %v488
        %v609 = vunpack.c.l.b16 %v489
        %v610 = vunpack.c.h.b16 %v489
        %v611 = vunpack.c.l.b16 %v490
        %v612 = vunpack.c.h.b16 %v490
        %v613 = vunpack.c.l.b16 %v491
        %v614 = vunpack.c.h.b16 %v491
        %v615 = vunpack.c.l.b16 %v492
        %v616 = vunpack.c.h.b16 %v492
        %v617 = vunpack.c.l.b16 %v493
        %v618 = vunpack.c.h.b16 %v493
        %v619 = vunpack.c.l.b16 %v494
        %v620 = vunpack.c.h.b16 %v494
        %v621 = vunpack.c.l.b16 %v495
        %v622 = vunpack.c.h.b16 %v495
        %v623 = vunpack.c.l.b16 %v496
        %v624 = vunpack.c.h.b16 %v496
        %v625 = vunpack.c.l.b16 %v497
        %v626 = vunpack.c.h.b16 %v497
        %v627 = vunpack.c.l.b16 %v498
        %v628 = vunpack.c.h.b16 %v498
        %v629 = vunpack.c.l.b16 %v499
        %v630 = vunpack.c.h.b16 %v499
        %v631 = vunpack.c.l.b16 %v500
        %v632 = vunpack.c.h.b16 %v500
        %v633 = vpack.c.b16 %v571, %v569
        %v634 = vpack.c.b16 %v572, %v570
        %v635 = vpack.c.b16 %v575, %v573
        %v636 = vpack.c.b16 %v576, %v574
        %v637 = vpack.c.b16 %v579, %v577
        %v638 = vpack.c.b16 %v580, %v578
        %v639 = vpack.c.b16 %v583, %v581
        %v640 = vpack.c.b16 %v584, %v582
        %v641 = vpack.c.b16 %v587, %v585
        %v642 = vpack.c.b16 %v588, %v586
        %v643 = vpack.c.b16 %v591, %v589
        %v644 = vpack.c.b16 %v592, %v590
        %v645 = vpack.c.b16 %v595, %v593
        %v646 = vpack.c.b16 %v596, %v594
        %v647 = vpack.c.b16 %v599, %v597
        %v648 = vpack.c.b16 %v600, %v598
        %v649 = vpack.c.b16 %v603, %v601
        %v650 = vpack.c.b16 %v604, %v602
        %v651 = vpack.c.b16 %v607, %v605
        %v652 = vpack.c.b16 %v608, %v606
        %v653 = vpack.c.b16 %v611, %v609
        %v654 = vpack.c.b16 %v612, %v610
        %v655 = vpack.c.b16 %v615, %v613
        %v656 = vpack.c.b16 %v616, %v614
        %v657 = vpack.c.b16 %v619, %v617
        %v658 = vpack.c.b16 %v620, %v618
        %v659 = vpack.c.b16 %v623, %v621
        %v660 = vpack.c.b16 %v624, %v622
        %v661 = vpack.c.b16 %v627, %v625
        %v662 = vpack.c.b16 %v628, %v626
        %v663 = vpack.c.b16 %v631, %v629
        %v664 = vpack.c.b16 %v632, %v630
        %v729 = vunpack.c.l.b16 %v505
        %v730 = vunpack.c.l.b16 %v506
        %v731 = vunpack.c.l.b16 %v507
        %v732 = vunpack.c.l.b16 %v508
        %v733 = vunpack.c.l.b16 %v509
        %v734 = vunpack.c.l.b16 %v510
        %v735 = vunpack.c.l.b16 %v511
        %v736 = vunpack.c.l.b16 %v512
        %v737 = vunpack.c.l.b16 %v513
        %v738 = vunpack.c.l.b16 %v514
        %v739 = vunpack.c.l.b16 %v515
        %v740 = vunpack.c.l.b16 %v516
        %v741 = vunpack.c.l.b16 %v517
        %v742 = vunpack.c.l.b16 %v518
        %v743 = vunpack.c.l.b16 %v519
        %v744 = vunpack.c.l.b16 %v520
        %v745 = vunpack.c.l.b16 %v521
        %v746 = vunpack.c.l.b16 %v522
        %v747 = vunpack.c.l.b16 %v523
        %v748 = vunpack.c.l.b16 %v524
        %v749 = vunpack.c.l.b16 %v525
        %v750 = vunpack.c.l.b16 %v526
        %v751 = vunpack.c.l.b16 %v527
        %v752 = vunpack.c.l.b16 %v528
        %v753 = vunpack.c.l.b16 %v529
        %v754 = vunpack.c.l.b16 %v530
        %v755 = vunpack.c.l.b16 %v531
        %v756 = vunpack.c.l.b16 %v532
        %v757 = vunpack.c.l.b16 %v533
        %v758 = vunpack.c.l.b16 %v534
        %v759 = vunpack.c.l.b16 %v535
        %v760 = vunpack.c.l.b16 %v536
        %v761 = vpack.c.b16 %v730, %v729
        %v762 = vpack.c.b16 %v732, %v731
        %v763 = vpack.c.b16 %v734, %v733
        %v764 = vpack.c.b16 %v736, %v735
        %v765 = vpack.c.b16 %v738, %v737
        %v766 = vpack.c.b16 %v740, %v739
        %v767 = vpack.c.b16 %v742, %v741
        %v768 = vpack.c.b16 %v744, %v743
        %v769 = vpack.c.b16 %v746, %v745
        %v770 = vpack.c.b16 %v748, %v747
        %v771 = vpack.c.b16 %v750, %v749
        %v772 = vpack.c.b16 %v752, %v751
        %v773 = vpack.c.b16 %v754, %v753
        %v774 = vpack.c.b16 %v756, %v755
        %v775 = vpack.c.b16 %v758, %v757
        %v776 = vpack.c.b16 %v760, %v759
        %793 = vmatpush.bf16.msra.mxu0 %v768
        %794 = vmatpush.bf16.msra.mxu0 %v767
        %795 = vmatpush.bf16.msra.mxu0 %v766
        %796 = vmatpush.bf16.msra.mxu0 %v765
        %797 = vmatpush.bf16.msra.mxu0 %v764
        %798 = vmatpush.bf16.msra.mxu0 %v763
        %799 = vmatpush.bf16.msra.mxu0 %v762
        %800 = vmatpush.bf16.msra.mxu0 %v761
        %801 = vmatmul.bf16.gmra.mxu0 %v633
        %v802 = vpop.f32.mrf.mxu0
        %v803 = vadd.f32 0.0, %v802
        %v804 = vpop.f32.mrf.mxu0
        %v805 = vadd.f32 0.0, %v804
        %806 = vmatmul.bf16.gmra.mxu0 %v635
        %v807 = vpop.f32.mrf.mxu0
        %v808 = vadd.f32 0.0, %v807
        %v809 = vpop.f32.mrf.mxu0
        %v810 = vadd.f32 0.0, %v809
        %811 = vmatmul.bf16.gmra.mxu0 %v637
        %v812 = vpop.f32.mrf.mxu0
        %v813 = vadd.f32 0.0, %v812
        %v814 = vpop.f32.mrf.mxu0
        %v815 = vadd.f32 0.0, %v814
        %816 = vmatmul.bf16.gmra.mxu0 %v639
        %v817 = vpop.f32.mrf.mxu0
        %v818 = vadd.f32 0.0, %v817
        %v819 = vpop.f32.mrf.mxu0
        %v820 = vadd.f32 0.0, %v819
        %821 = vmatmul.bf16.gmra.mxu0 %v641
        %v822 = vpop.f32.mrf.mxu0
        %v823 = vadd.f32 0.0, %v822
        %v824 = vpop.f32.mrf.mxu0
        %v825 = vadd.f32 0.0, %v824
        %826 = vmatmul.bf16.gmra.mxu0 %v643
        %v827 = vpop.f32.mrf.mxu0
        %v828 = vadd.f32 0.0, %v827
        %v829 = vpop.f32.mrf.mxu0
        %v830 = vadd.f32 0.0, %v829
        %831 = vmatmul.bf16.gmra.mxu0 %v645
        %v832 = vpop.f32.mrf.mxu0
        %v833 = vadd.f32 0.0, %v832
        %v834 = vpop.f32.mrf.mxu0
        %v835 = vadd.f32 0.0, %v834
        %836 = vmatmul.bf16.gmra.mxu0 %v647
        %v837 = vpop.f32.mrf.mxu0
        %v838 = vadd.f32 0.0, %v837
        %v839 = vpop.f32.mrf.mxu0
        %v840 = vadd.f32 0.0, %v839
        %841 = vmatmul.bf16.gmra.mxu0 %v649
        %v842 = vpop.f32.mrf.mxu0
        %v843 = vadd.f32 0.0, %v842
        %v844 = vpop.f32.mrf.mxu0
        %v845 = vadd.f32 0.0, %v844
        %846 = vmatmul.bf16.gmra.mxu0 %v651
        %v847 = vpop.f32.mrf.mxu0
        %v848 = vadd.f32 0.0, %v847
        %v849 = vpop.f32.mrf.mxu0
        %v850 = vadd.f32 0.0, %v849
        %851 = vmatmul.bf16.gmra.mxu0 %v653
        %v852 = vpop.f32.mrf.mxu0
        %v853 = vadd.f32 0.0, %v852
        %v854 = vpop.f32.mrf.mxu0
        %v855 = vadd.f32 0.0, %v854
        %856 = vmatmul.bf16.gmra.mxu0 %v655
        %v857 = vpop.f32.mrf.mxu0
        %v858 = vadd.f32 0.0, %v857
        %v859 = vpop.f32.mrf.mxu0
        %v860 = vadd.f32 0.0, %v859
        %861 = vmatmul.bf16.gmra.mxu0 %v657
        %v862 = vpop.f32.mrf.mxu0
        %v863 = vadd.f32 0.0, %v862
        %v864 = vpop.f32.mrf.mxu0
        %v865 = vadd.f32 0.0, %v864
        %866 = vmatmul.bf16.gmra.mxu0 %v659
        %v867 = vpop.f32.mrf.mxu0
        %v868 = vadd.f32 0.0, %v867
        %v869 = vpop.f32.mrf.mxu0
        %v870 = vadd.f32 0.0, %v869
        %871 = vmatmul.bf16.gmra.mxu0 %v661
        %v872 = vpop.f32.mrf.mxu0
        %v873 = vadd.f32 0.0, %v872
        %v874 = vpop.f32.mrf.mxu0
        %v875 = vadd.f32 0.0, %v874
        %876 = vmatmul.bf16.gmra.mxu0 %v663
        %v877 = vpop.f32.mrf.mxu0
        %v878 = vadd.f32 0.0, %v877
        %v879 = vpop.f32.mrf.mxu0
        %v880 = vadd.f32 0.0, %v879
        %881 = vdwg.mxu0
        %882 = vmatpush.bf16.msra.mxu0 %v776
        %883 = vmatpush.bf16.msra.mxu0 %v775
        %884 = vmatpush.bf16.msra.mxu0 %v774
        %885 = vmatpush.bf16.msra.mxu0 %v773
        %886 = vmatpush.bf16.msra.mxu0 %v772
        %887 = vmatpush.bf16.msra.mxu0 %v771
        %888 = vmatpush.bf16.msra.mxu0 %v770
        %889 = vmatpush.bf16.msra.mxu0 %v769
        %890 = vmatmul.bf16.gmra.mxu0 %v634
        %v891 = vpop.f32.mrf.mxu0
        %v892 = vadd.f32 %v803, %v891
        %v893 = vpop.f32.mrf.mxu0
        %v894 = vadd.f32 %v805, %v893
        %895 = vmatmul.bf16.gmra.mxu0 %v636
        %v896 = vpop.f32.mrf.mxu0
        %v897 = vadd.f32 %v808, %v896
        %v898 = vpop.f32.mrf.mxu0
        %v899 = vadd.f32 %v810, %v898
        %900 = vmatmul.bf16.gmra.mxu0 %v638
        %v901 = vpop.f32.mrf.mxu0
        %v902 = vadd.f32 %v813, %v901
        %v903 = vpop.f32.mrf.mxu0
        %v904 = vadd.f32 %v815, %v903
        %905 = vmatmul.bf16.gmra.mxu0 %v640
        %v906 = vpop.f32.mrf.mxu0
        %v907 = vadd.f32 %v818, %v906
        %v908 = vpop.f32.mrf.mxu0
        %v909 = vadd.f32 %v820, %v908
        %910 = vmatmul.bf16.gmra.mxu0 %v642
        %v911 = vpop.f32.mrf.mxu0
        %v912 = vadd.f32 %v823, %v911
        %v913 = vpop.f32.mrf.mxu0
        %v914 = vadd.f32 %v825, %v913
        %915 = vmatmul.bf16.gmra.mxu0 %v644
        %v916 = vpop.f32.mrf.mxu0
        %v917 = vadd.f32 %v828, %v916
        %v918 = vpop.f32.mrf.mxu0
        %v919 = vadd.f32 %v830, %v918
        %920 = vmatmul.bf16.gmra.mxu0 %v646
        %v921 = vpop.f32.mrf.mxu0
        %v922 = vadd.f32 %v833, %v921
        %v923 = vpop.f32.mrf.mxu0
        %v924 = vadd.f32 %v835, %v923
        %925 = vmatmul.bf16.gmra.mxu0 %v648
        %v926 = vpop.f32.mrf.mxu0
        %v927 = vadd.f32 %v838, %v926
        %v928 = vpop.f32.mrf.mxu0
        %v929 = vadd.f32 %v840, %v928
        %930 = vmatmul.bf16.gmra.mxu0 %v650
        %v931 = vpop.f32.mrf.mxu0
        %v932 = vadd.f32 %v843, %v931
        %v933 = vpop.f32.mrf.mxu0
        %v934 = vadd.f32 %v845, %v933
        %935 = vmatmul.bf16.gmra.mxu0 %v652
        %v936 = vpop.f32.mrf.mxu0
        %v937 = vadd.f32 %v848, %v936
        %v938 = vpop.f32.mrf.mxu0
        %v939 = vadd.f32 %v850, %v938
        %940 = vmatmul.bf16.gmra.mxu0 %v654
        %v941 = vpop.f32.mrf.mxu0
        %v942 = vadd.f32 %v853, %v941
        %v943 = vpop.f32.mrf.mxu0
        %v944 = vadd.f32 %v855, %v943
        %945 = vmatmul.bf16.gmra.mxu0 %v656
        %v946 = vpop.f32.mrf.mxu0
        %v947 = vadd.f32 %v858, %v946
        %v948 = vpop.f32.mrf.mxu0
        %v949 = vadd.f32 %v860, %v948
        %950 = vmatmul.bf16.gmra.mxu0 %v658
        %v951 = vpop.f32.mrf.mxu0
        %v952 = vadd.f32 %v863, %v951
        %v953 = vpop.f32.mrf.mxu0
        %v954 = vadd.f32 %v865, %v953
        %955 = vmatmul.bf16.gmra.mxu0 %v660
        %v956 = vpop.f32.mrf.mxu0
        %v957 = vadd.f32 %v868, %v956
        %v958 = vpop.f32.mrf.mxu0
        %v959 = vadd.f32 %v870, %v958
        %960 = vmatmul.bf16.gmra.mxu0 %v662
        %v961 = vpop.f32.mrf.mxu0
        %v962 = vadd.f32 %v873, %v961
        %v963 = vpop.f32.mrf.mxu0
        %v964 = vadd.f32 %v875, %v963
        %965 = vmatmul.bf16.gmra.mxu0 %v664
        %v966 = vpop.f32.mrf.mxu0
        %v967 = vadd.f32 %v878, %v966
        %v968 = vpop.f32.mrf.mxu0
        %v969 = vadd.f32 %v880, %v968
        %970 = vdwg.mxu0
        %v971 = vmul.f32 %v892, 0.9
        %v972 = vmul.f32 %v894, 0.9
        %v973 = vmul.f32 %v897, 0.9
        %v974 = vmul.f32 %v899, 0.9
        %v975 = vmul.f32 %v902, 0.9
        %v976 = vmul.f32 %v904, 0.9
        %v977 = vmul.f32 %v907, 0.9
        %v978 = vmul.f32 %v909, 0.9
        %v979 = vmul.f32 %v912, 0.9
        %v980 = vmul.f32 %v914, 0.9
        %v981 = vmul.f32 %v917, 0.9
        %v982 = vmul.f32 %v919, 0.9
        %v983 = vmul.f32 %v922, 0.9
        %v984 = vmul.f32 %v924, 0.9
        %v985 = vmul.f32 %v927, 0.9
        %v986 = vmul.f32 %v929, 0.9
        %v987 = vmul.f32 %v932, 0.9
        %v988 = vmul.f32 %v934, 0.9
        %v989 = vmul.f32 %v937, 0.9
        %v990 = vmul.f32 %v939, 0.9
        %v991 = vmul.f32 %v942, 0.9
        %v992 = vmul.f32 %v944, 0.9
        %v993 = vmul.f32 %v947, 0.9
        %v994 = vmul.f32 %v949, 0.9
        %v995 = vmul.f32 %v952, 0.9
        %v996 = vmul.f32 %v954, 0.9
        %v997 = vmul.f32 %v957, 0.9
        %v998 = vmul.f32 %v959, 0.9
        %v999 = vmul.f32 %v962, 0.9
        %v1000 = vmul.f32 %v964, 0.9
        %v1001 = vmul.f32 %v967, 0.9
        %v1002 = vmul.f32 %v969, 0.9
        %s1003 = scalar_lea.vmem [#allocation6], %s468
        %v1004 = vld [vmem:[%s1003] sm:$0xff]
        %v1005 = vld [vmem:[%s1003 + $0x8] sm:$0xff]
        %v1006 = vld [vmem:[%s1003 + $0x10] sm:$0xff]
        %v1007 = vld [vmem:[%s1003 + $0x18] sm:$0xff]
        %v1008 = vld [vmem:[%s1003 + $0x20] sm:$0xff]
        %v1009 = vld [vmem:[%s1003 + $0x28] sm:$0xff]
        %v1010 = vld [vmem:[%s1003 + $0x30] sm:$0xff]
        %v1011 = vld [vmem:[%s1003 + $0x38] sm:$0xff]
        %v1012 = vld [vmem:[%s1003 + $0x40] sm:$0xff]
        %v1013 = vld [vmem:[%s1003 + $0x48] sm:$0xff]
        %v1014 = vld [vmem:[%s1003 + $0x50] sm:$0xff]
        %v1015 = vld [vmem:[%s1003 + $0x58] sm:$0xff]
        %v1016 = vld [vmem:[%s1003 + $0x60] sm:$0xff]
        %v1017 = vld [vmem:[%s1003 + $0x68] sm:$0xff]
        %v1018 = vld [vmem:[%s1003 + $0x70] sm:$0xff]
        %v1019 = vld [vmem:[%s1003 + $0x78] sm:$0xff]
        %v1020 = vld [vmem:[%s1003 + $0x80] sm:$0xff]
        %v1021 = vld [vmem:[%s1003 + $0x88] sm:$0xff]
        %v1022 = vld [vmem:[%s1003 + $0x90] sm:$0xff]
        %v1023 = vld [vmem:[%s1003 + $0x98] sm:$0xff]
        %v1024 = vld [vmem:[%s1003 + $0xa0] sm:$0xff]
        %v1025 = vld [vmem:[%s1003 + $0xa8] sm:$0xff]
        %v1026 = vld [vmem:[%s1003 + $0xb0] sm:$0xff]
        %v1027 = vld [vmem:[%s1003 + $0xb8] sm:$0xff]
        %v1028 = vld [vmem:[%s1003 + $0xc0] sm:$0xff]
        %v1029 = vld [vmem:[%s1003 + $0xc8] sm:$0xff]
        %v1030 = vld [vmem:[%s1003 + $0xd0] sm:$0xff]
        %v1031 = vld [vmem:[%s1003 + $0xd8] sm:$0xff]
        %v1032 = vld [vmem:[%s1003 + $0xe0] sm:$0xff]
        %v1033 = vld [vmem:[%s1003 + $0xe8] sm:$0xff]
        %v1034 = vld [vmem:[%s1003 + $0xf0] sm:$0xff]
        %v1035 = vld [vmem:[%s1003 + $0xf8] sm:$0xff]
        %v1036 = vmul.f32 %v1004, 0.1
        %v1037 = vmul.f32 %v1005, 0.1
        %v1038 = vmul.f32 %v1006, 0.1
        %v1039 = vmul.f32 %v1007, 0.1
        %v1040 = vmul.f32 %v1008, 0.1
        %v1041 = vmul.f32 %v1009, 0.1
        %v1042 = vmul.f32 %v1010, 0.1
        %v1043 = vmul.f32 %v1011, 0.1
        %v1044 = vmul.f32 %v1012, 0.1
        %v1045 = vmul.f32 %v1013, 0.1
        %v1046 = vmul.f32 %v1014, 0.1
        %v1047 = vmul.f32 %v1015, 0.1
        %v1048 = vmul.f32 %v1016, 0.1
        %v1049 = vmul.f32 %v1017, 0.1
        %v1050 = vmul.f32 %v1018, 0.1
        %v1051 = vmul.f32 %v1019, 0.1
        %v1052 = vmul.f32 %v1020, 0.1
        %v1053 = vmul.f32 %v1021, 0.1
        %v1054 = vmul.f32 %v1022, 0.1
        %v1055 = vmul.f32 %v1023, 0.1
        %v1056 = vmul.f32 %v1024, 0.1
        %v1057 = vmul.f32 %v1025, 0.1
        %v1058 = vmul.f32 %v1026, 0.1
        %v1059 = vmul.f32 %v1027, 0.1
        %v1060 = vmul.f32 %v1028, 0.1
        %v1061 = vmul.f32 %v1029, 0.1
        %v1062 = vmul.f32 %v1030, 0.1
        %v1063 = vmul.f32 %v1031, 0.1
        %v1064 = vmul.f32 %v1032, 0.1
        %v1065 = vmul.f32 %v1033, 0.1
        %v1066 = vmul.f32 %v1034, 0.1
        %v1067 = vmul.f32 %v1035, 0.1
        %v1068 = vadd.f32 %v971, %v1036
        %v1069 = vadd.f32 %v972, %v1037
        %v1070 = vadd.f32 %v973, %v1038
        %v1071 = vadd.f32 %v974, %v1039
        %v1072 = vadd.f32 %v975, %v1040
        %v1073 = vadd.f32 %v976, %v1041
        %v1074 = vadd.f32 %v977, %v1042
        %v1075 = vadd.f32 %v978, %v1043
        %v1076 = vadd.f32 %v979, %v1044
        %v1077 = vadd.f32 %v980, %v1045
        %v1078 = vadd.f32 %v981, %v1046
        %v1079 = vadd.f32 %v982, %v1047
        %v1080 = vadd.f32 %v983, %v1048
        %v1081 = vadd.f32 %v984, %v1049
        %v1082 = vadd.f32 %v985, %v1050
        %v1083 = vadd.f32 %v986, %v1051
        %v1084 = vadd.f32 %v987, %v1052
        %v1085 = vadd.f32 %v988, %v1053
        %v1086 = vadd.f32 %v989, %v1054
        %v1087 = vadd.f32 %v990, %v1055
        %v1088 = vadd.f32 %v991, %v1056
        %v1089 = vadd.f32 %v992, %v1057
        %v1090 = vadd.f32 %v993, %v1058
        %v1091 = vadd.f32 %v994, %v1059
        %v1092 = vadd.f32 %v995, %v1060
        %v1093 = vadd.f32 %v996, %v1061
        %v1094 = vadd.f32 %v997, %v1062
        %v1095 = vadd.f32 %v998, %v1063
        %v1096 = vadd.f32 %v999, %v1064
        %v1097 = vadd.f32 %v1000, %v1065
        %v1098 = vadd.f32 %v1001, %v1066
        %v1099 = vadd.f32 %v1002, %v1067
        %p1100 = scmp.lt.s32.totalorder %s34, 2
        // Predicated region
        $region57: #{tpu_custom_call.1} parent=39 // pred_check
          %p1101 = pneg %p1100
        $region58: #{tpu_custom_call.1} parent=39 // pred_check_branch
          %1103 = sbr.rel (%p1101) target = $region60
        $region59: #{tpu_custom_call.1} parent=39 // pred_region
          %v1104 = vpack.c.bf16 %v1068, %v1068
          %v1105 = vpack.c.bf16 %v1069, %v1069
          %v1106 = vpack.c.bf16 %v1070, %v1070
          %v1107 = vpack.c.bf16 %v1071, %v1071
          %v1108 = vpack.c.bf16 %v1072, %v1072
          %v1109 = vpack.c.bf16 %v1073, %v1073
          %v1110 = vpack.c.bf16 %v1074, %v1074
          %v1111 = vpack.c.bf16 %v1075, %v1075
          %v1112 = vpack.c.bf16 %v1076, %v1076
          %v1113 = vpack.c.bf16 %v1077, %v1077
          %v1114 = vpack.c.bf16 %v1078, %v1078
          %v1115 = vpack.c.bf16 %v1079, %v1079
          %v1116 = vpack.c.bf16 %v1080, %v1080
          %v1117 = vpack.c.bf16 %v1081, %v1081
          %v1118 = vpack.c.bf16 %v1082, %v1082
          %v1119 = vpack.c.bf16 %v1083, %v1083
          %v1120 = vpack.c.bf16 %v1084, %v1084
          %v1121 = vpack.c.bf16 %v1085, %v1085
          %v1122 = vpack.c.bf16 %v1086, %v1086
          %v1123 = vpack.c.bf16 %v1087, %v1087
          %v1124 = vpack.c.bf16 %v1088, %v1088
          %v1125 = vpack.c.bf16 %v1089, %v1089
          %v1126 = vpack.c.bf16 %v1090, %v1090
          %v1127 = vpack.c.bf16 %v1091, %v1091
          %v1128 = vpack.c.bf16 %v1092, %v1092
          %v1129 = vpack.c.bf16 %v1093, %v1093
          %v1130 = vpack.c.bf16 %v1094, %v1094
          %v1131 = vpack.c.bf16 %v1095, %v1095
          %v1132 = vpack.c.bf16 %v1096, %v1096
          %v1133 = vpack.c.bf16 %v1097, %v1097
          %v1134 = vpack.c.bf16 %v1098, %v1098
          %v1135 = vpack.c.bf16 %v1099, %v1099
          %s1136 = sadd.s32 %s467, %s468
          %s1137 = sshra.s32 %s1136, 3
          %s1138 = sand.u32 %s1136, 7
          %s1139 = smul.addr %s1137, 4
          %s1140 = scalar_lea.vmem [#allocation2], %s1139
          %1141 = vst [vmem:[%s1140] sm:$0xf] %v1104
          %1142 = vst [vmem:[%s1140 + $0x4] sm:$0xf] %v1105
          %1143 = vst [vmem:[%s1140 + $0x8] sm:$0xf] %v1106
          %1144 = vst [vmem:[%s1140 + $0xc] sm:$0xf] %v1107
          %1145 = vst [vmem:[%s1140 + $0x10] sm:$0xf] %v1108
          %1146 = vst [vmem:[%s1140 + $0x14] sm:$0xf] %v1109
          %1147 = vst [vmem:[%s1140 + $0x18] sm:$0xf] %v1110
          %1148 = vst [vmem:[%s1140 + $0x1c] sm:$0xf] %v1111
          %1149 = vst [vmem:[%s1140 + $0x20] sm:$0xf] %v1112
          %1150 = vst [vmem:[%s1140 + $0x24] sm:$0xf] %v1113
          %1151 = vst [vmem:[%s1140 + $0x28] sm:$0xf] %v1114
          %1152 = vst [vmem:[%s1140 + $0x2c] sm:$0xf] %v1115
          %1153 = vst [vmem:[%s1140 + $0x30] sm:$0xf] %v1116
          %1154 = vst [vmem:[%s1140 + $0x34] sm:$0xf] %v1117
          %1155 = vst [vmem:[%s1140 + $0x38] sm:$0xf] %v1118
          %1156 = vst [vmem:[%s1140 + $0x3c] sm:$0xf] %v1119
          %1157 = vst [vmem:[%s1140 + $0x40] sm:$0xf] %v1120
          %1158 = vst [vmem:[%s1140 + $0x44] sm:$0xf] %v1121
          %1159 = vst [vmem:[%s1140 + $0x48] sm:$0xf] %v1122
          %1160 = vst [vmem:[%s1140 + $0x4c] sm:$0xf] %v1123
          %1161 = vst [vmem:[%s1140 + $0x50] sm:$0xf] %v1124
          %1162 = vst [vmem:[%s1140 + $0x54] sm:$0xf] %v1125
          %1163 = vst [vmem:[%s1140 + $0x58] sm:$0xf] %v1126
          %1164 = vst [vmem:[%s1140 + $0x5c] sm:$0xf] %v1127
          %1165 = vst [vmem:[%s1140 + $0x60] sm:$0xf] %v1128
          %1166 = vst [vmem:[%s1140 + $0x64] sm:$0xf] %v1129
          %1167 = vst [vmem:[%s1140 + $0x68] sm:$0xf] %v1130
          %1168 = vst [vmem:[%s1140 + $0x6c] sm:$0xf] %v1131
          %1169 = vst [vmem:[%s1140 + $0x70] sm:$0xf] %v1132
          %1170 = vst [vmem:[%s1140 + $0x74] sm:$0xf] %v1133
          %1171 = vst [vmem:[%s1140 + $0x78] sm:$0xf] %v1134
          %1172 = vst [vmem:[%s1140 + $0x7c] sm:$0xf] %v1135
        $region60: #{tpu_custom_call.1} parent=39 // pred_fallthru
          _
        %p1173 = scmp.eq.s32.totalorder %s34, 2
        // Predicated region
        $region61: #{tpu_custom_call.1} parent=39 // pred_check
          %p1174 = pneg %p1173
        $region62: #{tpu_custom_call.1} parent=39 // pred_check_branch
          %1176 = sbr.rel (%p1174) target = $region64
        $region63: #{tpu_custom_call.1} parent=39 // pred_region
          %v1177 = vpack.c.bf16 %v1068, %v1068
          %v1178 = vpack.c.bf16 %v1069, %v1069
          %v1179 = vpack.c.bf16 %v1070, %v1070
          %v1180 = vpack.c.bf16 %v1071, %v1071
          %v1181 = vpack.c.bf16 %v1072, %v1072
          %v1182 = vpack.c.bf16 %v1073, %v1073
          %v1183 = vpack.c.bf16 %v1074, %v1074
          %v1184 = vpack.c.bf16 %v1075, %v1075
          %v1185 = vpack.c.bf16 %v1076, %v1076
          %v1186 = vpack.c.bf16 %v1077, %v1077
          %v1187 = vpack.c.bf16 %v1078, %v1078
          %v1188 = vpack.c.bf16 %v1079, %v1079
          %v1189 = vpack.c.bf16 %v1080, %v1080
          %v1190 = vpack.c.bf16 %v1081, %v1081
          %v1191 = vpack.c.bf16 %v1082, %v1082
          %v1192 = vpack.c.bf16 %v1083, %v1083
          %v1193 = vpack.c.bf16 %v1084, %v1084
          %v1194 = vpack.c.bf16 %v1085, %v1085
          %v1195 = vpack.c.bf16 %v1086, %v1086
          %v1196 = vpack.c.bf16 %v1087, %v1087
          %v1197 = vpack.c.bf16 %v1088, %v1088
          %v1198 = vpack.c.bf16 %v1089, %v1089
          %v1199 = vpack.c.bf16 %v1090, %v1090
          %v1200 = vpack.c.bf16 %v1091, %v1091
          %v1201 = vpack.c.bf16 %v1092, %v1092
          %v1202 = vpack.c.bf16 %v1093, %v1093
          %v1203 = vpack.c.bf16 %v1094, %v1094
          %v1204 = vpack.c.bf16 %v1095, %v1095
          %v1205 = vpack.c.bf16 %v1096, %v1096
          %v1206 = vpack.c.bf16 %v1097, %v1097
          %v1207 = vpack.c.bf16 %v1098, %v1098
          %v1208 = vpack.c.bf16 %v1099, %v1099
          %1209 = vst [vmem:[%s338] sm:$0xf] %v1177
          %1210 = vst [vmem:[%s338 + $0x4] sm:$0xf] %v1178
          %1211 = vst [vmem:[%s338 + $0x8] sm:$0xf] %v1179
          %1212 = vst [vmem:[%s338 + $0xc] sm:$0xf] %v1180
          %1213 = vst [vmem:[%s338 + $0x10] sm:$0xf] %v1181
          %1214 = vst [vmem:[%s338 + $0x14] sm:$0xf] %v1182
          %1215 = vst [vmem:[%s338 + $0x18] sm:$0xf] %v1183
          %1216 = vst [vmem:[%s338 + $0x1c] sm:$0xf] %v1184
          %1217 = vst [vmem:[%s338 + $0x20] sm:$0xf] %v1185
          %1218 = vst [vmem:[%s338 + $0x24] sm:$0xf] %v1186
          %1219 = vst [vmem:[%s338 + $0x28] sm:$0xf] %v1187
          %1220 = vst [vmem:[%s338 + $0x2c] sm:$0xf] %v1188
          %1221 = vst [vmem:[%s338 + $0x30] sm:$0xf] %v1189
          %1222 = vst [vmem:[%s338 + $0x34] sm:$0xf] %v1190
          %1223 = vst [vmem:[%s338 + $0x38] sm:$0xf] %v1191
          %1224 = vst [vmem:[%s338 + $0x3c] sm:$0xf] %v1192
          %1225 = vst [vmem:[%s338 + $0x40] sm:$0xf] %v1193
          %1226 = vst [vmem:[%s338 + $0x44] sm:$0xf] %v1194
          %1227 = vst [vmem:[%s338 + $0x48] sm:$0xf] %v1195
          %1228 = vst [vmem:[%s338 + $0x4c] sm:$0xf] %v1196
          %1229 = vst [vmem:[%s338 + $0x50] sm:$0xf] %v1197
          %1230 = vst [vmem:[%s338 + $0x54] sm:$0xf] %v1198
          %1231 = vst [vmem:[%s338 + $0x58] sm:$0xf] %v1199
          %1232 = vst [vmem:[%s338 + $0x5c] sm:$0xf] %v1200
          %1233 = vst [vmem:[%s338 + $0x60] sm:$0xf] %v1201
          %1234 = vst [vmem:[%s338 + $0x64] sm:$0xf] %v1202
          %1235 = vst [vmem:[%s338 + $0x68] sm:$0xf] %v1203
          %1236 = vst [vmem:[%s338 + $0x6c] sm:$0xf] %v1204
          %1237 = vst [vmem:[%s338 + $0x70] sm:$0xf] %v1205
          %1238 = vst [vmem:[%s338 + $0x74] sm:$0xf] %v1206
          %1239 = vst [vmem:[%s338 + $0x78] sm:$0xf] %v1207
          %1240 = vst [vmem:[%s338 + $0x7c] sm:$0xf] %v1208
          %v1241 = vld [vmem:[#allocation8] sm:$0xf]
          %v1242 = vld [vmem:[#allocation8 + $0x4] sm:$0xf]
          %v1243 = vld [vmem:[#allocation8 + $0x8] sm:$0xf]
          %v1244 = vld [vmem:[#allocation8 + $0xc] sm:$0xf]
          %v1245 = vld [vmem:[#allocation8 + $0x10] sm:$0xf]
          %v1246 = vld [vmem:[#allocation8 + $0x14] sm:$0xf]
          %v1247 = vld [vmem:[#allocation8 + $0x18] sm:$0xf]
          %v1248 = vld [vmem:[#allocation8 + $0x1c] sm:$0xf]
          %v1249 = vld [vmem:[#allocation8 + $0x20] sm:$0xf]
          %v1250 = vld [vmem:[#allocation8 + $0x24] sm:$0xf]
          %v1251 = vld [vmem:[#allocation8 + $0x28] sm:$0xf]
          %v1252 = vld [vmem:[#allocation8 + $0x2c] sm:$0xf]
          %v1253 = vld [vmem:[#allocation8 + $0x30] sm:$0xf]
          %v1254 = vld [vmem:[#allocation8 + $0x34] sm:$0xf]
          %v1255 = vld [vmem:[#allocation8 + $0x38] sm:$0xf]
          %v1256 = vld [vmem:[#allocation8 + $0x3c] sm:$0xf]
          %v1257 = vld [vmem:[%s3] sm:$0x1]
          %v1259 = vperm.slane %v1257, 0
          %v1293 = vunpack.c.l.b16 %v1177
          %v1294 = vunpack.c.l.b16 %v1178
          %v1295 = vunpack.c.l.b16 %v1179
          %v1296 = vunpack.c.l.b16 %v1180
          %v1297 = vunpack.c.l.b16 %v1181
          %v1298 = vunpack.c.l.b16 %v1182
          %v1299 = vunpack.c.l.b16 %v1183
          %v1300 = vunpack.c.l.b16 %v1184
          %v1301 = vunpack.c.l.b16 %v1185
          %v1302 = vunpack.c.l.b16 %v1186
          %v1303 = vunpack.c.l.b16 %v1187
          %v1304 = vunpack.c.l.b16 %v1188
          %v1305 = vunpack.c.l.b16 %v1189
          %v1306 = vunpack.c.l.b16 %v1190
          %v1307 = vunpack.c.l.b16 %v1191
          %v1308 = vunpack.c.l.b16 %v1192
          %v1309 = vunpack.c.l.b16 %v1193
          %v1310 = vunpack.c.l.b16 %v1194
          %v1311 = vunpack.c.l.b16 %v1195
          %v1312 = vunpack.c.l.b16 %v1196
          %v1313 = vunpack.c.l.b16 %v1197
          %v1314 = vunpack.c.l.b16 %v1198
          %v1315 = vunpack.c.l.b16 %v1199
          %v1316 = vunpack.c.l.b16 %v1200
          %v1317 = vunpack.c.l.b16 %v1201
          %v1318 = vunpack.c.l.b16 %v1202
          %v1319 = vunpack.c.l.b16 %v1203
          %v1320 = vunpack.c.l.b16 %v1204
          %v1321 = vunpack.c.l.b16 %v1205
          %v1322 = vunpack.c.l.b16 %v1206
          %v1323 = vunpack.c.l.b16 %v1207
          %v1324 = vunpack.c.l.b16 %v1208
          %v1325 = vpack.c.b16 %v1294, %v1293
          %v1326 = vpack.c.b16 %v1296, %v1295
          %v1327 = vpack.c.b16 %v1298, %v1297
          %v1328 = vpack.c.b16 %v1300, %v1299
          %v1329 = vpack.c.b16 %v1302, %v1301
          %v1330 = vpack.c.b16 %v1304, %v1303
          %v1331 = vpack.c.b16 %v1306, %v1305
          %v1332 = vpack.c.b16 %v1308, %v1307
          %v1333 = vpack.c.b16 %v1310, %v1309
          %v1334 = vpack.c.b16 %v1312, %v1311
          %v1335 = vpack.c.b16 %v1314, %v1313
          %v1336 = vpack.c.b16 %v1316, %v1315
          %v1337 = vpack.c.b16 %v1318, %v1317
          %v1338 = vpack.c.b16 %v1320, %v1319
          %v1339 = vpack.c.b16 %v1322, %v1321
          %v1340 = vpack.c.b16 %v1324, %v1323
          %v1373 = vunpack.c.l.b16 %v1241
          %v1374 = vunpack.c.l.b16 %v1242
          %v1375 = vunpack.c.l.b16 %v1243
          %v1376 = vunpack.c.l.b16 %v1244
          %v1377 = vunpack.c.l.b16 %v1245
          %v1378 = vunpack.c.l.b16 %v1246
          %v1379 = vunpack.c.l.b16 %v1247
          %v1380 = vunpack.c.l.b16 %v1248
          %v1381 = vunpack.c.l.b16 %v1249
          %v1382 = vunpack.c.l.b16 %v1250
          %v1383 = vunpack.c.l.b16 %v1251
          %v1384 = vunpack.c.l.b16 %v1252
          %v1385 = vunpack.c.l.b16 %v1253
          %v1386 = vunpack.c.l.b16 %v1254
          %v1387 = vunpack.c.l.b16 %v1255
          %v1388 = vunpack.c.l.b16 %v1256
          %v1389 = vpack.c.b16 %v1374, %v1373
          %v1390 = vpack.c.b16 %v1376, %v1375
          %v1391 = vpack.c.b16 %v1378, %v1377
          %v1392 = vpack.c.b16 %v1380, %v1379
          %v1393 = vpack.c.b16 %v1382, %v1381
          %v1394 = vpack.c.b16 %v1384, %v1383
          %v1395 = vpack.c.b16 %v1386, %v1385
          %v1396 = vpack.c.b16 %v1388, %v1387
          %1405 = vmatpush.bf16.msra.mxu0 %v1396
          %1406 = vmatpush.bf16.msra.mxu0 %v1395
          %1407 = vmatpush.bf16.msra.mxu0 %v1394
          %1408 = vmatpush.bf16.msra.mxu0 %v1393
          %1409 = vmatpush.bf16.msra.mxu0 %v1392
          %1410 = vmatpush.bf16.msra.mxu0 %v1391
          %1411 = vmatpush.bf16.msra.mxu0 %v1390
          %1412 = vmatpush.bf16.msra.mxu0 %v1389
          %1413 = vmatmul.bf16.gmra.mxu0 %v1325
          %v1414 = vpop.f32.mrf.mxu0
          %v1415 = vadd.f32 %v1259, %v1414
          %v1416 = vpop.f32.mrf.mxu0
          %v1417 = vadd.f32 %v1259, %v1416
          %1418 = vmatmul.bf16.gmra.mxu0 %v1326
          %v1419 = vpop.f32.mrf.mxu0
          %v1420 = vadd.f32 %v1259, %v1419
          %v1421 = vpop.f32.mrf.mxu0
          %v1422 = vadd.f32 %v1259, %v1421
          %1423 = vmatmul.bf16.gmra.mxu0 %v1327
          %v1424 = vpop.f32.mrf.mxu0
          %v1425 = vadd.f32 %v1259, %v1424
          %v1426 = vpop.f32.mrf.mxu0
          %v1427 = vadd.f32 %v1259, %v1426
          %1428 = vmatmul.bf16.gmra.mxu0 %v1328
          %v1429 = vpop.f32.mrf.mxu0
          %v1430 = vadd.f32 %v1259, %v1429
          %v1431 = vpop.f32.mrf.mxu0
          %v1432 = vadd.f32 %v1259, %v1431
          %1433 = vmatmul.bf16.gmra.mxu0 %v1329
          %v1434 = vpop.f32.mrf.mxu0
          %v1435 = vadd.f32 %v1259, %v1434
          %v1436 = vpop.f32.mrf.mxu0
          %v1437 = vadd.f32 %v1259, %v1436
          %1438 = vmatmul.bf16.gmra.mxu0 %v1330
          %v1439 = vpop.f32.mrf.mxu0
          %v1440 = vadd.f32 %v1259, %v1439
          %v1441 = vpop.f32.mrf.mxu0
          %v1442 = vadd.f32 %v1259, %v1441
          %1443 = vmatmul.bf16.gmra.mxu0 %v1331
          %v1444 = vpop.f32.mrf.mxu0
          %v1445 = vadd.f32 %v1259, %v1444
          %v1446 = vpop.f32.mrf.mxu0
          %v1447 = vadd.f32 %v1259, %v1446
          %1448 = vmatmul.bf16.gmra.mxu0 %v1332
          %v1449 = vpop.f32.mrf.mxu0
          %v1450 = vadd.f32 %v1259, %v1449
          %v1451 = vpop.f32.mrf.mxu0
          %v1452 = vadd.f32 %v1259, %v1451
          %1453 = vmatmul.bf16.gmra.mxu0 %v1333
          %v1454 = vpop.f32.mrf.mxu0
          %v1455 = vadd.f32 %v1259, %v1454
          %v1456 = vpop.f32.mrf.mxu0
          %v1457 = vadd.f32 %v1259, %v1456
          %1458 = vmatmul.bf16.gmra.mxu0 %v1334
          %v1459 = vpop.f32.mrf.mxu0
          %v1460 = vadd.f32 %v1259, %v1459
          %v1461 = vpop.f32.mrf.mxu0
          %v1462 = vadd.f32 %v1259, %v1461
          %1463 = vmatmul.bf16.gmra.mxu0 %v1335
          %v1464 = vpop.f32.mrf.mxu0
          %v1465 = vadd.f32 %v1259, %v1464
          %v1466 = vpop.f32.mrf.mxu0
          %v1467 = vadd.f32 %v1259, %v1466
          %1468 = vmatmul.bf16.gmra.mxu0 %v1336
          %v1469 = vpop.f32.mrf.mxu0
          %v1470 = vadd.f32 %v1259, %v1469
          %v1471 = vpop.f32.mrf.mxu0
          %v1472 = vadd.f32 %v1259, %v1471
          %1473 = vmatmul.bf16.gmra.mxu0 %v1337
          %v1474 = vpop.f32.mrf.mxu0
          %v1475 = vadd.f32 %v1259, %v1474
          %v1476 = vpop.f32.mrf.mxu0
          %v1477 = vadd.f32 %v1259, %v1476
          %1478 = vmatmul.bf16.gmra.mxu0 %v1338
          %v1479 = vpop.f32.mrf.mxu0
          %v1480 = vadd.f32 %v1259, %v1479
          %v1481 = vpop.f32.mrf.mxu0
          %v1482 = vadd.f32 %v1259, %v1481
          %1483 = vmatmul.bf16.gmra.mxu0 %v1339
          %v1484 = vpop.f32.mrf.mxu0
          %v1485 = vadd.f32 %v1259, %v1484
          %v1486 = vpop.f32.mrf.mxu0
          %v1487 = vadd.f32 %v1259, %v1486
          %1488 = vmatmul.bf16.gmra.mxu0 %v1340
          %v1489 = vpop.f32.mrf.mxu0
          %v1490 = vadd.f32 %v1259, %v1489
          %v1491 = vpop.f32.mrf.mxu0
          %v1492 = vadd.f32 %v1259, %v1491
          %1493 = vdwg.mxu0
          %v1494 = vtanh.pop %v1415
          %v1495 = vtanh.pop %v1417
          %v1496 = vtanh.pop %v1420
          %v1497 = vtanh.pop %v1422
          %v1498 = vtanh.pop %v1425
          %v1499 = vtanh.pop %v1427
          %v1500 = vtanh.pop %v1430
          %v1501 = vtanh.pop %v1432
          %v1502 = vtanh.pop %v1435
          %v1503 = vtanh.pop %v1437
          %v1504 = vtanh.pop %v1440
          %v1505 = vtanh.pop %v1442
          %v1506 = vtanh.pop %v1445
          %v1507 = vtanh.pop %v1447
          %v1508 = vtanh.pop %v1450
          %v1509 = vtanh.pop %v1452
          %v1510 = vtanh.pop %v1455
          %v1511 = vtanh.pop %v1457
          %v1512 = vtanh.pop %v1460
          %v1513 = vtanh.pop %v1462
          %v1514 = vtanh.pop %v1465
          %v1515 = vtanh.pop %v1467
          %v1516 = vtanh.pop %v1470
          %v1517 = vtanh.pop %v1472
          %v1518 = vtanh.pop %v1475
          %v1519 = vtanh.pop %v1477
          %v1520 = vtanh.pop %v1480
          %v1521 = vtanh.pop %v1482
          %v1522 = vtanh.pop %v1485
          %v1523 = vtanh.pop %v1487
          %v1524 = vtanh.pop %v1490
          %v1525 = vtanh.pop %v1492
          %v1526 = vld [vmem:[%s4] sm:$0x1]
          %v1528 = vperm.slane %v1526, 0
          %v1530 = vmul.f32 %v1494, %v1528
          %v1531 = vmul.f32 %v1495, %v1528
          %v1532 = vmul.f32 %v1496, %v1528
          %v1533 = vmul.f32 %v1497, %v1528
          %v1534 = vmul.f32 %v1498, %v1528
          %v1535 = vmul.f32 %v1499, %v1528
          %v1536 = vmul.f32 %v1500, %v1528
          %v1537 = vmul.f32 %v1501, %v1528
          %v1538 = vmul.f32 %v1502, %v1528
          %v1539 = vmul.f32 %v1503, %v1528
          %v1540 = vmul.f32 %v1504, %v1528
          %v1541 = vmul.f32 %v1505, %v1528
          %v1542 = vmul.f32 %v1506, %v1528
          %v1543 = vmul.f32 %v1507, %v1528
          %v1544 = vmul.f32 %v1508, %v1528
          %v1545 = vmul.f32 %v1509, %v1528
          %v1546 = vmul.f32 %v1510, %v1528
          %v1547 = vmul.f32 %v1511, %v1528
          %v1548 = vmul.f32 %v1512, %v1528
          %v1549 = vmul.f32 %v1513, %v1528
          %v1550 = vmul.f32 %v1514, %v1528
          %v1551 = vmul.f32 %v1515, %v1528
          %v1552 = vmul.f32 %v1516, %v1528
          %v1553 = vmul.f32 %v1517, %v1528
          %v1554 = vmul.f32 %v1518, %v1528
          %v1555 = vmul.f32 %v1519, %v1528
          %v1556 = vmul.f32 %v1520, %v1528
          %v1557 = vmul.f32 %v1521, %v1528
          %v1558 = vmul.f32 %v1522, %v1528
          %v1559 = vmul.f32 %v1523, %v1528
          %v1560 = vmul.f32 %v1524, %v1528
          %v1561 = vmul.f32 %v1525, %v1528
          %v1562 = vadd.f32 %v1530, %v1531
          %v1563 = vadd.f32 %v1562, %v1532
          %v1564 = vadd.f32 %v1563, %v1533
          %v1565 = vadd.f32 %v1564, %v1534
          %v1566 = vadd.f32 %v1565, %v1535
          %v1567 = vadd.f32 %v1566, %v1536
          %v1568 = vadd.f32 %v1567, %v1537
          %v1569 = vadd.f32 %v1568, %v1538
          %v1570 = vadd.f32 %v1569, %v1539
          %v1571 = vadd.f32 %v1570, %v1540
          %v1572 = vadd.f32 %v1571, %v1541
          %v1573 = vadd.f32 %v1572, %v1542
          %v1574 = vadd.f32 %v1573, %v1543
          %v1575 = vadd.f32 %v1574, %v1544
          %v1576 = vadd.f32 %v1575, %v1545
          %v1577 = vadd.f32 %v1576, %v1546
          %v1578 = vadd.f32 %v1577, %v1547
          %v1579 = vadd.f32 %v1578, %v1548
          %v1580 = vadd.f32 %v1579, %v1549
          %v1581 = vadd.f32 %v1580, %v1550
          %v1582 = vadd.f32 %v1581, %v1551
          %v1583 = vadd.f32 %v1582, %v1552
          %v1584 = vadd.f32 %v1583, %v1553
          %v1585 = vadd.f32 %v1584, %v1554
          %v1586 = vadd.f32 %v1585, %v1555
          %v1587 = vadd.f32 %v1586, %v1556
          %v1588 = vadd.f32 %v1587, %v1557
          %v1589 = vadd.f32 %v1588, %v1558
          %v1590 = vadd.f32 %v1589, %v1559
          %v1591 = vadd.f32 %v1590, %v1560
          %v1592 = vadd.f32 %v1591, %v1561
          %v1593 = vrot.slane %v1592, 4
          %v1594 = vadd.f32 %v1592, %v1593
          %v1595 = vrot.slane %v1594, 2
          %v1596 = vadd.f32 %v1594, %v1595
          %v1597 = vrot.slane %v1596, 1
          %v1598 = vadd.f32 %v1596, %v1597
          %v1599 = vld [vmem:[%s345] sm:$0xff]
          %v1600 = vadd.f32 %v1599, %v1598
          %1601 = vst [vmem:[%s345] sm:$0xff] %v1600
        $region64: #{tpu_custom_call.1} parent=39 // pred_fallthru
          _
        %s1602 = sand.u32 %s173, 1
        %s1603 = scalar_lea.sflag [#allocation5], %s1602
        %s1604 = sand.u32 %s173, 1
        %s1605 = smul.addr %s1604, 128
        %s1606 = scalar_lea.vmem [#allocation9], %s1605
        %s1607 = sand.u32 %s199, 1
        %s1608 = scalar_lea.sflag [#allocation11], %s1607
        %s1609 = sand.u32 %s199, 1
        %s1610 = smul.addr %s1609, 8
        %s1611 = scalar_lea.vmem [#allocation10], %s1610
        // Predicated region
        $region65: #{tpu_custom_call.1} parent=39 // pred_check
          %p1612 = pneg %p183
        $region66: #{tpu_custom_call.1} parent=39 // pred_check_branch
          %1614 = sbr.rel (%p1612) target = $region68
        $region67: #{tpu_custom_call.1} parent=39 // pred_region
          %p1615 = scmp.eq.s32.totalorder %s34, 2
          %s1616 = scalar_select %p1615, %s35, 0
          %s1617 = smul.u32 32, %s1616
          %1619 = vsyncadd %s1603, 0
          %s1620 = smul.addr %s33, 32
          %s1621 = sadd.s32 %s1617, %s1620
          %s1622 = smul.addr %s1621, 4
          %s1623 = scalar_lea.hbm %s5, %s1622
          %s1624 = sshll.u32 %s1606, 4
          %s1625 = int_to_ptr.vmem [resolvable:$true] %s1624
          %s1626 = sshll.u32 %s1623, 4
          %s1627 = int_to_ptr.hbm [resolvable:$true] %s1626
          %1632 = dma.vmem_to_hbm [thread:$0]  %s1625, 2048, %s1627, %s1603, 64, 64, 4
        $region68: #{tpu_custom_call.1} parent=39 // pred_fallthru
          _
        // Predicated region
        $region69: #{tpu_custom_call.1} parent=39 // pred_check
          %p1633 = pneg %p209
        $region70: #{tpu_custom_call.1} parent=39 // pred_check_branch
          %1635 = sbr.rel (%p1633) target = $region72
        $region71: #{tpu_custom_call.1} parent=39 // pred_region
          %1637 = vsyncadd %s1608, 0
          %s1638 = smul.addr %s33, 8
          %s1639 = scalar_lea.hbm %s6, %s1638
          %s1641 = sshll.u32 %s1611, 4
          %s1642 = int_to_ptr.vmem [resolvable:$true] %s1641
          %s1643 = sshll.u32 %s1639, 4
          %s1644 = int_to_ptr.hbm [resolvable:$true] %s1643
          %1646 = dma.vmem_to_hbm [thread:$0]  %s1642, 128, %s1644, %s1608
        $region72: #{tpu_custom_call.1} parent=39 // pred_fallthru
          _
      $region40: #{tpu_custom_call.1} parent=5 // pred_fallthru
        _
      %p1647 = scmp.le.s32.totalorder 2, %s23
      // Predicated region
      $region73: #{tpu_custom_call.1} parent=5 // pred_check
        %p1648 = pneg %p1647
      $region74: #{tpu_custom_call.1} parent=5 // pred_check_branch
        %1650 = sbr.rel (%p1648) target = $region76
      $region75: #{tpu_custom_call.1} parent=5 // pred_region
        %s1651 = ssub.s32 %s23, 2
        // Predicated region
        $region77: #{tpu_custom_call.1} parent=75 // pred_check
          %p1652 = pneg %p189
        $region78: #{tpu_custom_call.1} parent=75 // pred_check_branch
          %1654 = sbr.rel (%p1652) target = $region80
        $region79: #{tpu_custom_call.1} parent=75 // pred_region
          %s1655 = sand.u32 %s174, 1
          %s1656 = scalar_lea.sflag [#allocation5], %s1655
          %s1657 = sand.u32 %s174, 1
          %s1658 = smul.addr %s1657, 128
          %s1659 = scalar_lea.vmem [#allocation9], %s1658
          %1661 = dma.done %s1656, 2048
        $region80: #{tpu_custom_call.1} parent=75 // pred_fallthru
          _
        // Predicated region
        $region81: #{tpu_custom_call.1} parent=75 // pred_check
          %p1662 = pneg %p215
        $region82: #{tpu_custom_call.1} parent=75 // pred_check_branch
          %1664 = sbr.rel (%p1662) target = $region84
        $region83: #{tpu_custom_call.1} parent=75 // pred_region
          %s1665 = sand.u32 %s200, 1
          %s1666 = scalar_lea.sflag [#allocation11], %s1665
          %s1667 = sand.u32 %s200, 1
          %s1668 = smul.addr %s1667, 8
          %s1669 = scalar_lea.vmem [#allocation10], %s1668
          %1671 = dma.done %s1666, 128
        $region84: #{tpu_custom_call.1} parent=75 // pred_fallthru
          _
      $region76: #{tpu_custom_call.1} parent=5 // pred_fallthru
        _
    $region6: #{tpu_custom_call.1} parent=1 // loop_footer
      %s27 = sadd.s32 1, %s23
    $region7: #{tpu_custom_call.1} parent=1 // loop_footer_branch
      %22 = sbr.rel target = $region3
    $region8: #{tpu_custom_call.1} parent=1 // loop_exit
      _
    %1672 = vsyncpa [#allocation4], 1
    %s1673 = scalar_lea.sflag [#allocation4], 1
    %1674 = vsyncpa %s1673, 1
    %1675 = vsyncpa [#allocation7], 1
    %1676 = vsyncpa [#allocation5], 1
    %s1677 = scalar_lea.sflag [#allocation5], 1
    %1678 = vsyncpa %s1677, 1
    %1679 = vsyncpa [#allocation11], 1
    %s1680 = scalar_lea.sflag [#allocation11], 1
    %1681 = vsyncpa %s1680, 1

</llo_original>
